<compile_context>
chip_gen: v7x
topology: tpu7x:2x2x1
jax: 0.10.0
libtpu: 0.0.40
codegen_flags: <defaults>
</compile_context>

<pallas_src>
import functools

import jax
import jax.numpy as jnp
from jax import lax
from jax.experimental import pallas as pl
from jax.experimental.pallas import tpu as pltpu

F32 = jnp.float32
_VMEM = pl.BlockSpec(memory_space=pltpu.MemorySpace.VMEM)
SLAB_W = 128  # lane-dense output slab width (one full f32 vreg row)


def _round_up(x, m):
    return ((x + m - 1) // m) * m


# --------------------------------------------------------------------------
# Fused forward kernel (single gridless invocation, everything VMEM resident)
# --------------------------------------------------------------------------
def _fused_bmil_kernel(a_ref, v_ref, w_ref, out_ref, *, static, aoff, voff, woff):
    B = static["batch"]
    obs = static["obs_dim"]
    ac = static["ac_shape"]
    a_enc = static["a_enc"]
    bd = static["belief_dim"]
    n_oe = static["n_oe"]
    dec_h = static["dec_h"]
    agent_bs = static["agent_bs"]
    do_fwd = static["do_fwd"]
    do_reg = static["do_reg"]
    sec_w = static["sec_w"]

    def mm(a, w):
        return jnp.dot(a, w, preferred_element_type=F32)

    def W(name):                       # weight matrix view from the weight slab
        r0, k, n = woff[name]
        return w_ref[r0:r0 + k, 0:n]

    def V(name):                       # (1, d) parameter vector from the vec slab
        r0, n = voff[name]
        return v_ref[r0:r0 + 1, 0:n]

    def A(name):                       # per-step activation block from act slab
        r0, k, n = aoff[name]
        return a_ref[r0:r0 + k, 0:n]

    def relu(x):
        return jnp.maximum(x, 0.0)

    # ---------------- observation normalization: clip((x-mean)*rsqrt(var+eps)) ----
    mu = A("rms_mean")
    inv_std = lax.rsqrt(A("rms_var") + 1e-8)          # EUP rsqrt (free slot)
    ob = jnp.clip((A("curr_ob") - mu) * inv_std, -10.0, 10.0)

    prev_ac = A("prev_ac")
    prev_belief = A("prev_belief")

    # ---------------- encoders ----------------
    enc_ac = relu(mm(prev_ac, W("ae_w")) + V("ae_b"))
    x = ob
    for i in range(n_oe):
        x = relu(mm(x, W(f"oe_w{i}")) + V(f"oe_b{i}"))
    x_enc = x

    # ---------------- GRUCell: fused gates (r|z|n lane-stacked -> 3 dots) ----------
    gi = mm(x_enc, W("gru_wix")) + mm(enc_ac, W("gru_wia")) + V("gru_bi")   # (B, 3bd)
    gh = mm(prev_belief, W("gru_wh")) + V("gru_bh")                          # (B, 3bd)
    r_gate = jax.nn.sigmoid(gi[:, 0:bd] + gh[:, 0:bd])
    z_gate = jax.nn.sigmoid(gi[:, bd:2 * bd] + gh[:, bd:2 * bd])
    n_gate = jnp.tanh(gi[:, 2 * bd:3 * bd] + r_gate * gh[:, 2 * bd:3 * bd])
    belief = (1.0 - z_gate) * n_gate + z_gate * prev_belief

    # ---------------- decoders dfwd|dbwd|dac fused + per-sample L2 losses ----------
    # LHS sublane-stacked (3B rows), weights lane-stacked / block-diagonal so the
    # three decoders never mix; unused cross quadrants are junk that is sliced away.
    def l2(pred, tgt):
        # l2_loss_criterion assumed = per-sample mean over the feature axis.
        d = pred - tgt
        return jnp.mean(d * d, axis=-1, keepdims=True)

    zero = jnp.zeros((B, 1), F32)
    fwd_loss = bwd_loss = ac_loss = zero
    if do_fwd or do_reg:
        states3 = jnp.concatenate([prev_belief, belief, prev_belief], axis=0)
        if sec_w > a_enc:
            enc_ac_p = jnp.concatenate(
                [enc_ac, jnp.zeros((B, sec_w - a_enc), F32)], axis=-1)
        else:
            enc_ac_p = enc_ac
        if sec_w > obs:
            ob_p = jnp.concatenate([ob, jnp.zeros((B, sec_w - obs), F32)], axis=-1)
        else:
            ob_p = ob
        sec3 = jnp.concatenate([enc_ac_p, enc_ac_p, ob_p], axis=0)
        h = relu(mm(states3, W("dec_w0s")) + mm(sec3, W("dec_w0x")) + V("dec_b0"))
        for i in range(1, len(dec_h)):
            h = relu(mm(h, W(f"dec_wm{i}")) + V(f"dec_bm{i}"))
        pred = mm(h, W("dec_wout")) + V("dec_bout")        # (3B, obs+obs+ac)
        if do_fwd:
            fwd_loss = l2(pred[0:B, 0:obs], ob)
        if do_reg:
            # prev_ob only normalized when it is actually consumed.
            prev_ob = jnp.clip((A("prev_ob") - mu) * inv_std, -10.0, 10.0)
            bwd_loss = l2(pred[B:2 * B, obs:2 * obs], prev_ob)
            ac_loss = l2(pred[2 * B:3 * B, 2 * obs:2 * obs + ac], prev_ac)
    # k-step losses are identically zero in forward() (ob_tpk / ob_tmkm1 are None)
    reg_loss = fwd_loss + bwd_loss + ac_loss

    # ---------------- critic | actor | discriminator layer-0 in one fused dot ------
    cad0 = mm(belief, W("cad_w0b")) + mm(ob, W("cad_w0o")) + V("cad_b0")   # (B, 192)
    ca_h = relu(cad0[:, 0:128])                                            # critic|actor
    ca_h = relu(mm(ca_h, W("ca_w1")) + V("ca_b1"))                         # block-diag
    head = mm(ca_h, W("ca_head")) + V("head_b")                            # (B, 1+ac)
    value = head[:, 0:1]
    a_mean = head[:, 1:1 + ac]

    logstd = V("logstd")                                                   # (1, ac)
    std = jnp.exp(logstd)
    action_sampled = a_mean + std * A("noise")
    rowid = lax.broadcasted_iota(jnp.int32, (B, ac), 0)
    action = jnp.where(rowid < agent_bs, action_sampled, A("expert_ac"))

    # log-prob of the pre-expert-concat SAMPLE: torch passes the local `action`
    # (from action_dist.sample), not model_return.action, to logprobs_and_entropy.
    diff = action_sampled - a_mean
    inv_two_var = 0.5 * jnp.exp(-2.0 * logstd)
    log_probs = jnp.sum(
        -(diff * diff) * inv_two_var - logstd - 0.5 * jnp.log(2.0 * jnp.pi),
        axis=-1, keepdims=True)

    # ---------------- discriminator (out_d == out_b numerically; detach is grad-only)
    dacs = relu(mm(action, W("dae_w")) + V("dae_b"))
    ds_h = relu(cad0[:, 128:192] + mm(dacs, W("ds_w0c")))   # layer-0 bias already in cad0
    ds_h = relu(mm(ds_h, W("ds_w1")) + V("ds_b1"))
    disc = jax.nn.sigmoid(mm(ds_h, W("ds_w2")) + V("ds_b2"))

    # ---------------- assemble (B, 128) slab in registers, single unmasked store ---
    used = bd + 1 + ac + 1 + 1 + 1
    pieces = [belief, value, action, log_probs, disc, reg_loss]
    if SLAB_W > used:
        pieces.append(jnp.zeros((B, SLAB_W - used), F32))
    out_ref[...] = jnp.concatenate(pieces, axis=-1)


# --------------------------------------------------------------------------
# Parameter construction: synthetic weights, pre-fused and packed into slabs
# --------------------------------------------------------------------------
def make_params(key, cfg):
    obs = cfg["obs_dim"]
    ac = cfg["ac_shape"]
    a_enc = cfg["action_encoding_dim"]
    d_enc = cfg["discr_action_encoding_dim"]
    hid = list(cfg["obs_encoder_hidden"])
    bd = cfg["belief_dim"]
    obs_enc = hid[-1]
    dec_h = list(reversed(hid))
    L = len(dec_h)
    sec_w = max(a_enc, obs)

    kit = iter(jax.random.split(key, 256))

    def rnd(din, dout, scale=0.1):
        return scale * jax.random.normal(next(kit), (din, dout), dtype=F32)

    weights = {}   # name -> fused matrix
    vecs = {}      # name -> 1D vector

    # observation encoder (Linear + ReLU chain)
    dims = [obs] + hid
    for i in range(len(hid)):
        weights[f"oe_w{i}"] = rnd(dims[i], dims[i + 1])
        vecs[f"oe_b{i}"] = jnp.zeros((dims[i + 1],), F32)

    # action encoder (Linear + ReLU)
    weights["ae_w"] = rnd(ac, a_enc)
    vecs["ae_b"] = jnp.zeros((a_enc,), F32)

    # GRUCell, gate order (r, z, n); input is [x_enc | enc_ac]
    wi = rnd(obs_enc + a_enc, 3 * bd)
    wh = rnd(bd, 3 * bd)
    weights["gru_wix"] = wi[:obs_enc, :]
    weights["gru_wia"] = wi[obs_enc:, :]
    weights["gru_wh"] = wh
    vecs["gru_bi"] = jnp.zeros((3 * bd,), F32)
    vecs["gru_bh"] = jnp.zeros((3 * bd,), F32)

    # three 1-step decoders (Linear+ReLU hidden, final Linear) fused:
    #   dfwd(prev_belief, enc_ac) -> obs, dbwd(belief, enc_ac) -> obs,
    #   dac(prev_belief, ob) -> ac
    def mk_dec(sec_dim, out_dim):
        d = [bd + sec_dim] + dec_h + [out_dim]
        ws = [rnd(d[i], d[i + 1]) for i in range(len(d) - 1)]
        bs = [jnp.zeros((d[i + 1],), F32) for i in range(len(d) - 1)]
        return ws, bs

    fw, fb = mk_dec(a_enc, obs)
    bw, bb = mk_dec(a_enc, obs)
    aw, ab = mk_dec(obs, ac)

    def pad_rows(w, rows):
        return jnp.zeros((rows, w.shape[1]), F32).at[:w.shape[0], :].set(w)

    weights["dec_w0s"] = jnp.concatenate(
        [fw[0][:bd, :], bw[0][:bd, :], aw[0][:bd, :]], axis=1)
    weights["dec_w0x"] = jnp.concatenate(
        [pad_rows(fw[0][bd:, :], sec_w), pad_rows(bw[0][bd:, :], sec_w),
         pad_rows(aw[0][bd:, :], sec_w)], axis=1)
    vecs["dec_b0"] = jnp.concatenate([fb[0], bb[0], ab[0]])
    for i in range(1, L):
        weights[f"dec_wm{i}"] = jax.scipy.linalg.block_diag(fw[i], bw[i], aw[i])
        vecs[f"dec_bm{i}"] = jnp.concatenate([fb[i], bb[i], ab[i]])
    weights["dec_wout"] = jax.scipy.linalg.block_diag(fw[L], bw[L], aw[L])
    vecs["dec_bout"] = jnp.concatenate([fb[L], bb[L], ab[L]])

    # critic / actor / discriminator (64-64 trunks)
    cw = [rnd(bd + obs, 64), rnd(64, 64), rnd(64, 1)]
    cb = [jnp.zeros((64,), F32), jnp.zeros((64,), F32), jnp.zeros((1,), F32)]
    aw_ = [rnd(bd + obs, 64), rnd(64, 64)]
    ab_ = [jnp.zeros((64,), F32), jnp.zeros((64,), F32)]
    fm_w = 0.01 * rnd(64, ac)            # DiagGaussian fc_mean weight scaled by 0.01
    fm_b = jnp.zeros((ac,), F32)
    logstd = jnp.full((ac,), cfg["init_logstd"], F32)
    dw = [rnd(bd + obs + d_enc, 64), rnd(64, 64), rnd(64, 1)]
    db = [jnp.zeros((64,), F32), jnp.zeros((64,), F32), jnp.zeros((1,), F32)]

    weights["cad_w0b"] = jnp.concatenate(
        [cw[0][:bd, :], aw_[0][:bd, :], dw[0][:bd, :]], axis=1)            # (bd, 192)
    weights["cad_w0o"] = jnp.concatenate(
        [cw[0][bd:bd + obs, :], aw_[0][bd:bd + obs, :], dw[0][bd:bd + obs, :]], axis=1)
    vecs["cad_b0"] = jnp.concatenate([cb[0], ab_[0], db[0]])
    weights["ca_w1"] = jax.scipy.linalg.block_diag(cw[1], aw_[1])          # (128, 128)
    vecs["ca_b1"] = jnp.concatenate([cb[1], ab_[1]])
    weights["ca_head"] = jax.scipy.linalg.block_diag(cw[2], fm_w)          # (128, 1+ac)
    vecs["head_b"] = jnp.concatenate([cb[2], fm_b])
    vecs["logstd"] = logstd
    weights["dae_w"] = rnd(ac, d_enc)
    vecs["dae_b"] = jnp.zeros((d_enc,), F32)
    weights["ds_w0c"] = dw[0][bd + obs:, :]
    weights["ds_w1"] = dw[1]
    vecs["ds_b1"] = db[1]
    weights["ds_w2"] = dw[2]
    vecs["ds_b2"] = db[2]

    # ---- pack the weight slab (ONE DMA; rows padded to multiples of 8) ----
    w_width = max(w.shape[1] for w in weights.values())
    woff, blocks, row = {}, [], 0
    for name, w in weights.items():
        k, n = w.shape
        kp = _round_up(k, 8)
        blocks.append(jnp.zeros((kp, w_width), F32).at[:k, :n].set(w))
        woff[name] = (row, k, n)
        row += kp
    w_slab = jnp.concatenate(blocks, axis=0)

    # ---- pack the (1, d) parameter vectors (ONE DMA) ----
    v_width = max(v.shape[0] for v in vecs.values())
    voff, vrows = {}, []
    for i, (name, v) in enumerate(vecs.items()):
        voff[name] = (i, v.shape[0])
        vrows.append(jnp.zeros((1, v_width), F32).at[0, :v.shape[0]].set(v))
    vec_slab = jnp.concatenate(vrows, axis=0)

    params = {
        "w_slab": w_slab,
        "vec_slab": vec_slab,
        "logstd": logstd,   # duplicate copy, used only for the entropy constant in glue
        "ob_rms": {"mean": jnp.zeros((obs,), F32),
                   "var": jnp.ones((obs,), F32),
                   "count": jnp.asarray(1e-4, F32)},
    }
    layout = {"woff": woff, "voff": voff, "sec_w": sec_w, "dec_h": tuple(dec_h)}
    return params, layout


# --------------------------------------------------------------------------
# Forward pass (BMIL.forward semantics)
# --------------------------------------------------------------------------
def rms_update(rms, x):
    batch_mean = jnp.mean(x, axis=0)
    batch_var = jnp.var(x, axis=0)
    batch_count = x.shape[0]
    delta = batch_mean - rms["mean"]
    tot = rms["count"] + batch_count
    new_mean = rms["mean"] + delta * batch_count / tot
    m_a = rms["var"] * rms["count"]
    m_b = batch_var * batch_count
    m2 = m_a + m_b + delta ** 2 * rms["count"] * batch_count / tot
    return {"mean": new_mean, "var": m2 / tot, "count": tot}


def bmil_forward(params, curr_memory, noise_key, cfg, layout):
    B = curr_memory["curr_ob"].shape[0]
    obs = cfg["obs_dim"]
    ac = cfg["ac_shape"]
    bd = cfg["belief_dim"]

    # torch _normalize(update_rms=True): update RunningMeanStd, normalize with
    # post-update statistics (done in-kernel from the packed stats rows).
    rms = rms_update(params["ob_rms"], curr_memory["curr_ob"])
    noise = jax.random.normal(noise_key, (B, ac), dtype=F32)

    # per-step activation slab: sublane-stacked at 8-row boundaries (one DMA)
    Bp = _round_up(max(B, 8), 8)
    act_w = max(obs, bd, ac)
    blocks = [
        ("curr_ob", curr_memory["curr_ob"], B),
        ("prev_ob", curr_memory["prev_ob"], B),
        ("prev_ac", curr_memory["prev_ac"], B),
        ("prev_belief", curr_memory["prev_belief"], B),
        ("expert_ac", curr_memory["expert_ac"], B),
        ("noise", noise, B),
        ("rms_mean", rms["mean"].reshape(1, -1), 1),
        ("rms_var", rms["var"].reshape(1, -1), 1),
    ]
    aoff, padded = {}, []
    for i, (name, arr, rows) in enumerate(blocks):
        aoff[name] = (i * Bp, rows, arr.shape[1])
        padded.append(jnp.pad(arr.astype(F32),
                              ((0, Bp - arr.shape[0]), (0, act_w - arr.shape[1]))))
    act_slab = jnp.concatenate(padded, axis=0)

    static = {
        "batch": B,
        "obs_dim": obs,
        "ac_shape": ac,
        "a_enc": cfg["action_encoding_dim"],
        "belief_dim": bd,
        "n_oe": len(cfg["obs_encoder_hidden"]),
        "dec_h": layout["dec_h"],
        "agent_bs": cfg["num_processes"] - cfg["num_expert_processes"],
        "do_fwd": (cfg["belief_loss_type"] == "task_agnostic")
                  or cfg["belief_regularization"],
        "do_reg": cfg["belief_regularization"],
        "sec_w": layout["sec_w"],
    }
    assert bd + ac + 4 <= SLAB_W

    kernel = functools.partial(_fused_bmil_kernel, static=static, aoff=aoff,
                               voff=layout["voff"], woff=layout["woff"])
    slab = pl.pallas_call(
        kernel,
        out_shape=jax.ShapeDtypeStruct((B, SLAB_W), F32),
        in_specs=[_VMEM, _VMEM, _VMEM],
        out_specs=_VMEM,
    )(act_slab, params["vec_slab"], params["w_slab"])

    col = 0
    belief_state = slab[:, col:col + bd]; col += bd
    value_estimate = slab[:, col:col + 1]; col += 1
    action = slab[:, col:col + ac]; col += ac
    ac_log_probs = slab[:, col:col + 1]; col += 1
    disc = slab[:, col:col + 1]; col += 1
    reg_loss = slab[:, col]; col += 1

    reg_loss_item = jnp.mean(reg_loss)
    # DiagGaussian entropy: batch-constant sum over action dims.
    dist_entropy = jnp.sum(0.5 + 0.5 * jnp.log(2.0 * jnp.pi) + params["logstd"])

    # detach_belief_module / .detach() only affect gradients; forward values of
    # out_d and out_b are identical, so both reuse `disc`.
    return {
        "belief_state": belief_state,
        "discriminator_out_d": disc,
        "discriminator_out_b": disc,
        "value_estimate": value_estimate,
        "action": action,
        "ac_log_probs": ac_log_probs,
        "dist_entropy": dist_entropy,
        "reg_loss": reg_loss,
        "reg_loss_item": reg_loss_item,
    }


# --------------------------------------------------------------------------
if __name__ == "__main__":
    cfg = {
        "obs_dim": 16,
        "ac_shape": 4,
        "action_encoding_dim": 8,
        "discr_action_encoding_dim": 8,
        "obs_encoder_hidden": [32, 32],
        "belief_dim": 32,
        "belief_loss_type": "task_agnostic",
        "belief_regularization": True,
        "num_processes": 8,
        "num_expert_processes": 4,
        "init_logstd": 0.0,
        "forward_jump": 2,   # conv k-step branch unused in forward()
        "backward_jump": 2,
    }

    key = jax.random.PRNGKey(0)
    kp, k1, k2, k3, k4, k5, kn = jax.random.split(key, 7)
    params, layout = make_params(kp, cfg)

    B = cfg["num_processes"]
    curr_memory = {
        "curr_ob": jax.random.normal(k1, (B, cfg["obs_dim"]), dtype=F32),
        "prev_ob": jax.random.normal(k2, (B, cfg["obs_dim"]), dtype=F32),
        "prev_ac": jax.random.normal(k3, (B, cfg["ac_shape"]), dtype=F32),
        "prev_belief": jax.random.normal(k4, (B, cfg["belief_dim"]), dtype=F32),
        "expert_ac": jax.random.normal(k5, (B, cfg["ac_shape"]), dtype=F32),
    }

    fwd = jax.jit(functools.partial(bmil_forward, cfg=cfg, layout=layout))
    out = fwd(params, curr_memory, kn)
    out = jax.block_until_ready(out)

    # sanity on shapes / finiteness
    assert out["belief_state"].shape == (B, cfg["belief_dim"])
    assert out["value_estimate"].shape == (B, 1)
    assert out["discriminator_out_d"].shape == (B, 1)
    assert out["action"].shape == (B, cfg["ac_shape"])
    assert out["ac_log_probs"].shape == (B, 1)
    assert out["reg_loss"].shape == (B,)
    assert jnp.all(jnp.isfinite(out["belief_state"]))
    assert jnp.all(jnp.isfinite(out["reg_loss"]))
    print("KERNEL_OK")
</pallas_src>

<mosaic_0001>
module attributes {stable_mosaic.version = 11 : i64} {
  func.func @_fused_bmil_kernel(%arg0: memref<64x32xf32, #tpu.memory_space<vmem>>, %arg1: memref<15x192xf32, #tpu.memory_space<vmem>>, %arg2: memref<816x192xf32, #tpu.memory_space<vmem>>, %arg3: memref<8x128xf32, #tpu.memory_space<vmem>>) attributes {dimension_semantics = [], scalar_prefetch = 0 : i64, scratch_operands = 0 : i64, tpu.core_type = #tpu.core_type<tc>} {
    %c48 = arith.constant 48 : index
    %c0 = arith.constant 0 : index
    %0 = vector.load %arg0[%c48, %c0] : memref<64x32xf32, #tpu.memory_space<vmem>>, vector<1x16xf32>
    %c56 = arith.constant 56 : index
    %c0_0 = arith.constant 0 : index
    %1 = vector.load %arg0[%c56, %c0_0] : memref<64x32xf32, #tpu.memory_space<vmem>>, vector<1x16xf32>
    %cst = arith.constant 9.99999993E-9 : f32
    %2 = vector.broadcast %cst : f32 to vector<1x16xf32>
    %3 = arith.addf %1, %2 : vector<1x16xf32>
    %4 = math.rsqrt %3 : vector<1x16xf32>
    %c0_1 = arith.constant 0 : index
    %c0_2 = arith.constant 0 : index
    %5 = vector.load %arg0[%c0_1, %c0_2] : memref<64x32xf32, #tpu.memory_space<vmem>>, vector<8x16xf32>
    %6 = vector.broadcast %0 : vector<1x16xf32> to vector<8x16xf32>
    %7 = arith.subf %5, %6 : vector<8x16xf32>
    %8 = vector.broadcast %4 : vector<1x16xf32> to vector<8x16xf32>
    %9 = arith.mulf %7, %8 : vector<8x16xf32>
    %cst_3 = arith.constant -1.000000e+01 : f32
    %cst_4 = arith.constant 1.000000e+01 : f32
    %10 = vector.broadcast %cst_3 : f32 to vector<8x16xf32>
    %11 = arith.maximumf %10, %9 : vector<8x16xf32>
    %12 = vector.broadcast %cst_4 : f32 to vector<8x16xf32>
    %13 = arith.minimumf %12, %11 : vector<8x16xf32>
    %c16 = arith.constant 16 : index
    %c0_5 = arith.constant 0 : index
    %14 = vector.load %arg0[%c16, %c0_5] : memref<64x32xf32, #tpu.memory_space<vmem>>, vector<8x4xf32>
    %c24 = arith.constant 24 : index
    %c0_6 = arith.constant 0 : index
    %15 = vector.load %arg0[%c24, %c0_6] : memref<64x32xf32, #tpu.memory_space<vmem>>, vector<8x32xf32>
    %c48_7 = arith.constant 48 : index
    %c0_8 = arith.constant 0 : index
    %16 = vector.load %arg2[%c48_7, %c0_8] : memref<816x192xf32, #tpu.memory_space<vmem>>, vector<4x8xf32>
    %cst_9 = arith.constant dense<0.000000e+00> : vector<8x8xf32>
    %17 = tpu.matmul %14, %16, %cst_9 {dimension_numbers = #tpu.dot_dimension_numbers<[1], [0], [0], [1], [0, 0, 1, 1], [], []>} : vector<8x4xf32>, vector<4x8xf32>, vector<8x8xf32> -> vector<8x8xf32>
    %c2 = arith.constant 2 : index
    %c0_10 = arith.constant 0 : index
    %18 = vector.load %arg1[%c2, %c0_10] : memref<15x192xf32, #tpu.memory_space<vmem>>, vector<1x8xf32>
    %19 = vector.broadcast %18 : vector<1x8xf32> to vector<8x8xf32>
    %20 = arith.addf %17, %19 : vector<8x8xf32>
    %cst_11 = arith.constant 0.000000e+00 : f32
    %21 = vector.broadcast %cst_11 : f32 to vector<8x8xf32>
    %22 = arith.maximumf %20, %21 : vector<8x8xf32>
    %c0_12 = arith.constant 0 : index
    %c0_13 = arith.constant 0 : index
    %23 = vector.load %arg2[%c0_12, %c0_13] : memref<816x192xf32, #tpu.memory_space<vmem>>, vector<16x32xf32>
    %cst_14 = arith.constant dense<0.000000e+00> : vector<8x32xf32>
    %24 = tpu.matmul %13, %23, %cst_14 {dimension_numbers = #tpu.dot_dimension_numbers<[1], [0], [0], [1], [0, 0, 1, 1], [], []>} : vector<8x16xf32>, vector<16x32xf32>, vector<8x32xf32> -> vector<8x32xf32>
    %c0_15 = arith.constant 0 : index
    %c0_16 = arith.constant 0 : index
    %25 = vector.load %arg1[%c0_15, %c0_16] : memref<15x192xf32, #tpu.memory_space<vmem>>, vector<1x32xf32>
    %26 = vector.broadcast %25 : vector<1x32xf32> to vector<8x32xf32>
    %27 = arith.addf %24, %26 : vector<8x32xf32>
    %cst_17 = arith.constant 0.000000e+00 : f32
    %28 = vector.broadcast %cst_17 : f32 to vector<8x32xf32>
    %29 = arith.maximumf %27, %28 : vector<8x32xf32>
    %c16_18 = arith.constant 16 : index
    %c0_19 = arith.constant 0 : index
    %30 = vector.load %arg2[%c16_18, %c0_19] : memref<816x192xf32, #tpu.memory_space<vmem>>, vector<32x32xf32>
    %cst_20 = arith.constant dense<0.000000e+00> : vector<8x32xf32>
    %31 = tpu.matmul %29, %30, %cst_20 {dimension_numbers = #tpu.dot_dimension_numbers<[1], [0], [0], [1], [0, 0, 1, 1], [], []>} : vector<8x32xf32>, vector<32x32xf32>, vector<8x32xf32> -> vector<8x32xf32>
    %c1 = arith.constant 1 : index
    %c0_21 = arith.constant 0 : index
    %32 = vector.load %arg1[%c1, %c0_21] : memref<15x192xf32, #tpu.memory_space<vmem>>, vector<1x32xf32>
    %33 = vector.broadcast %32 : vector<1x32xf32> to vector<8x32xf32>
    %34 = arith.addf %31, %33 : vector<8x32xf32>
    %cst_22 = arith.constant 0.000000e+00 : f32
    %35 = vector.broadcast %cst_22 : f32 to vector<8x32xf32>
    %36 = arith.maximumf %34, %35 : vector<8x32xf32>
    %c56_23 = arith.constant 56 : index
    %c0_24 = arith.constant 0 : index
    %37 = vector.load %arg2[%c56_23, %c0_24] : memref<816x192xf32, #tpu.memory_space<vmem>>, vector<32x96xf32>
    %cst_25 = arith.constant dense<0.000000e+00> : vector<8x96xf32>
    %38 = tpu.matmul %36, %37, %cst_25 {dimension_numbers = #tpu.dot_dimension_numbers<[1], [0], [0], [1], [0, 0, 1, 1], [], []>} : vector<8x32xf32>, vector<32x96xf32>, vector<8x96xf32> -> vector<8x96xf32>
    %c88 = arith.constant 88 : index
    %c0_26 = arith.constant 0 : index
    %39 = vector.load %arg2[%c88, %c0_26] : memref<816x192xf32, #tpu.memory_space<vmem>>, vector<8x96xf32>
    %cst_27 = arith.constant dense<0.000000e+00> : vector<8x96xf32>
    %40 = tpu.matmul %22, %39, %cst_27 {dimension_numbers = #tpu.dot_dimension_numbers<[1], [0], [0], [1], [0, 0, 1, 1], [], []>} : vector<8x8xf32>, vector<8x96xf32>, vector<8x96xf32> -> vector<8x96xf32>
    %41 = arith.addf %38, %40 : vector<8x96xf32>
    %c3 = arith.constant 3 : index
    %c0_28 = arith.constant 0 : index
    %42 = vector.load %arg1[%c3, %c0_28] : memref<15x192xf32, #tpu.memory_space<vmem>>, vector<1x96xf32>
    %43 = vector.broadcast %42 : vector<1x96xf32> to vector<8x96xf32>
    %44 = arith.addf %41, %43 : vector<8x96xf32>
    %c96 = arith.constant 96 : index
    %c0_29 = arith.constant 0 : index
    %45 = vector.load %arg2[%c96, %c0_29] : memref<816x192xf32, #tpu.memory_space<vmem>>, vector<32x96xf32>
    %cst_30 = arith.constant dense<0.000000e+00> : vector<8x96xf32>
    %46 = tpu.matmul %15, %45, %cst_30 {dimension_numbers = #tpu.dot_dimension_numbers<[1], [0], [0], [1], [0, 0, 1, 1], [], []>} : vector<8x32xf32>, vector<32x96xf32>, vector<8x96xf32> -> vector<8x96xf32>
    %c4 = arith.constant 4 : index
    %c0_31 = arith.constant 0 : index
    %47 = vector.load %arg1[%c4, %c0_31] : memref<15x192xf32, #tpu.memory_space<vmem>>, vector<1x96xf32>
    %48 = vector.broadcast %47 : vector<1x96xf32> to vector<8x96xf32>
    %49 = arith.addf %46, %48 : vector<8x96xf32>
    %50 = vector.extract_strided_slice %44 {offsets = [0, 0], sizes = [8, 32], strides = [1, 1]} : vector<8x96xf32> to vector<8x32xf32>
    %51 = vector.extract_strided_slice %49 {offsets = [0, 0], sizes = [8, 32], strides = [1, 1]} : vector<8x96xf32> to vector<8x32xf32>
    %52 = arith.addf %50, %51 : vector<8x32xf32>
    %53 = arith.negf %52 : vector<8x32xf32>
    %54 = math.exp %53 : vector<8x32xf32>
    %cst_32 = arith.constant 1.000000e+00 : f32
    %55 = vector.broadcast %cst_32 : f32 to vector<8x32xf32>
    %56 = arith.addf %55, %54 : vector<8x32xf32>
    %57 = arith.divf %55, %56 : vector<8x32xf32>
    %58 = vector.extract_strided_slice %44 {offsets = [0, 32], sizes = [8, 32], strides = [1, 1]} : vector<8x96xf32> to vector<8x32xf32>
    %59 = vector.extract_strided_slice %49 {offsets = [0, 32], sizes = [8, 32], strides = [1, 1]} : vector<8x96xf32> to vector<8x32xf32>
    %60 = arith.addf %58, %59 : vector<8x32xf32>
    %61 = arith.negf %60 : vector<8x32xf32>
    %62 = math.exp %61 : vector<8x32xf32>
    %cst_33 = arith.constant 1.000000e+00 : f32
    %63 = vector.broadcast %cst_33 : f32 to vector<8x32xf32>
    %64 = arith.addf %63, %62 : vector<8x32xf32>
    %65 = arith.divf %63, %64 : vector<8x32xf32>
    %66 = vector.extract_strided_slice %44 {offsets = [0, 64], sizes = [8, 32], strides = [1, 1]} : vector<8x96xf32> to vector<8x32xf32>
    %67 = vector.extract_strided_slice %49 {offsets = [0, 64], sizes = [8, 32], strides = [1, 1]} : vector<8x96xf32> to vector<8x32xf32>
    %68 = arith.mulf %57, %67 : vector<8x32xf32>
    %69 = arith.addf %66, %68 : vector<8x32xf32>
    %70 = math.tanh %69 : vector<8x32xf32>
    %cst_34 = arith.constant 1.000000e+00 : f32
    %71 = vector.broadcast %cst_34 : f32 to vector<8x32xf32>
    %72 = arith.subf %71, %65 : vector<8x32xf32>
    %73 = arith.mulf %72, %70 : vector<8x32xf32>
    %74 = arith.mulf %65, %15 : vector<8x32xf32>
    %75 = arith.addf %73, %74 : vector<8x32xf32>
    %76 = tpu.concatenate %15, %75, %15 in 0 : vector<8x32xf32>, vector<8x32xf32>, vector<8x32xf32> -> vector<24x32xf32>
    %cst_35 = arith.constant 0.000000e+00 : f32
    %77 = vector.broadcast %cst_35 : f32 to vector<8x8xf32>
    %78 = tpu.concatenate %22, %77 in 1 : vector<8x8xf32>, vector<8x8xf32> -> vector<8x16xf32>
    %79 = tpu.concatenate %78, %78, %13 in 0 : vector<8x16xf32>, vector<8x16xf32>, vector<8x16xf32> -> vector<24x16xf32>
    %c128 = arith.constant 128 : index
    %c0_36 = arith.constant 0 : index
    %80 = vector.load %arg2[%c128, %c0_36] : memref<816x192xf32, #tpu.memory_space<vmem>>, vector<32x96xf32>
    %cst_37 = arith.constant dense<0.000000e+00> : vector<24x96xf32>
    %81 = tpu.matmul %76, %80, %cst_37 {dimension_numbers = #tpu.dot_dimension_numbers<[1], [0], [0], [1], [0, 0, 1, 1], [], []>} : vector<24x32xf32>, vector<32x96xf32>, vector<24x96xf32> -> vector<24x96xf32>
    %c160 = arith.constant 160 : index
    %c0_38 = arith.constant 0 : index
    %82 = vector.load %arg2[%c160, %c0_38] : memref<816x192xf32, #tpu.memory_space<vmem>>, vector<16x96xf32>
    %cst_39 = arith.constant dense<0.000000e+00> : vector<24x96xf32>
    %83 = tpu.matmul %79, %82, %cst_39 {dimension_numbers = #tpu.dot_dimension_numbers<[1], [0], [0], [1], [0, 0, 1, 1], [], []>} : vector<24x16xf32>, vector<16x96xf32>, vector<24x96xf32> -> vector<24x96xf32>
    %84 = arith.addf %81, %83 : vector<24x96xf32>
    %c5 = arith.constant 5 : index
    %c0_40 = arith.constant 0 : index
    %85 = vector.load %arg1[%c5, %c0_40] : memref<15x192xf32, #tpu.memory_space<vmem>>, vector<1x96xf32>
    %86 = vector.broadcast %85 : vector<1x96xf32> to vector<24x96xf32>
    %87 = arith.addf %84, %86 : vector<24x96xf32>
    %cst_41 = arith.constant 0.000000e+00 : f32
    %88 = vector.broadcast %cst_41 : f32 to vector<24x96xf32>
    %89 = arith.maximumf %87, %88 : vector<24x96xf32>
    %c176 = arith.constant 176 : index
    %c0_42 = arith.constant 0 : index
    %90 = vector.load %arg2[%c176, %c0_42] : memref<816x192xf32, #tpu.memory_space<vmem>>, vector<96x96xf32>
    %cst_43 = arith.constant dense<0.000000e+00> : vector<24x96xf32>
    %91 = tpu.matmul %89, %90, %cst_43 {dimension_numbers = #tpu.dot_dimension_numbers<[1], [0], [0], [1], [0, 0, 1, 1], [], []>} : vector<24x96xf32>, vector<96x96xf32>, vector<24x96xf32> -> vector<24x96xf32>
    %c6 = arith.constant 6 : index
    %c0_44 = arith.constant 0 : index
    %92 = vector.load %arg1[%c6, %c0_44] : memref<15x192xf32, #tpu.memory_space<vmem>>, vector<1x96xf32>
    %93 = vector.broadcast %92 : vector<1x96xf32> to vector<24x96xf32>
    %94 = arith.addf %91, %93 : vector<24x96xf32>
    %cst_45 = arith.constant 0.000000e+00 : f32
    %95 = vector.broadcast %cst_45 : f32 to vector<24x96xf32>
    %96 = arith.maximumf %94, %95 : vector<24x96xf32>
    %c272 = arith.constant 272 : index
    %c0_46 = arith.constant 0 : index
    %97 = vector.load %arg2[%c272, %c0_46] : memref<816x192xf32, #tpu.memory_space<vmem>>, vector<96x36xf32>
    %cst_47 = arith.constant dense<0.000000e+00> : vector<24x36xf32>
    %98 = tpu.matmul %96, %97, %cst_47 {dimension_numbers = #tpu.dot_dimension_numbers<[1], [0], [0], [1], [0, 0, 1, 1], [], []>} : vector<24x96xf32>, vector<96x36xf32>, vector<24x36xf32> -> vector<24x36xf32>
    %c7 = arith.constant 7 : index
    %c0_48 = arith.constant 0 : index
    %99 = vector.load %arg1[%c7, %c0_48] : memref<15x192xf32, #tpu.memory_space<vmem>>, vector<1x36xf32>
    %100 = vector.broadcast %99 : vector<1x36xf32> to vector<24x36xf32>
    %101 = arith.addf %98, %100 : vector<24x36xf32>
    %102 = vector.extract_strided_slice %101 {offsets = [0, 0], sizes = [8, 16], strides = [1, 1]} : vector<24x36xf32> to vector<8x16xf32>
    %103 = arith.subf %102, %13 : vector<8x16xf32>
    %104 = arith.mulf %103, %103 : vector<8x16xf32>
    %cst_49 = arith.constant dense<0.000000e+00> : vector<8xf32>
    %105 = vector.multi_reduction <add>, %104, %cst_49 [1] : vector<8x16xf32> to vector<8xf32>
    %106 = vector.shape_cast %105 : vector<8xf32> to vector<8x1xf32>
    %cst_50 = arith.constant 1.600000e+01 : f32
    %107 = vector.broadcast %cst_50 : f32 to vector<8x1xf32>
    %108 = arith.divf %106, %107 : vector<8x1xf32>
    %c8 = arith.constant 8 : index
    %c0_51 = arith.constant 0 : index
    %109 = vector.load %arg0[%c8, %c0_51] : memref<64x32xf32, #tpu.memory_space<vmem>>, vector<8x16xf32>
    %110 = vector.broadcast %0 : vector<1x16xf32> to vector<8x16xf32>
    %111 = arith.subf %109, %110 : vector<8x16xf32>
    %112 = vector.broadcast %4 : vector<1x16xf32> to vector<8x16xf32>
    %113 = arith.mulf %111, %112 : vector<8x16xf32>
    %cst_52 = arith.constant -1.000000e+01 : f32
    %cst_53 = arith.constant 1.000000e+01 : f32
    %114 = vector.broadcast %cst_52 : f32 to vector<8x16xf32>
    %115 = arith.maximumf %114, %113 : vector<8x16xf32>
    %116 = vector.broadcast %cst_53 : f32 to vector<8x16xf32>
    %117 = arith.minimumf %116, %115 : vector<8x16xf32>
    %118 = vector.extract_strided_slice %101 {offsets = [8, 16], sizes = [8, 16], strides = [1, 1]} : vector<24x36xf32> to vector<8x16xf32>
    %119 = arith.subf %118, %117 : vector<8x16xf32>
    %120 = arith.mulf %119, %119 : vector<8x16xf32>
    %cst_54 = arith.constant dense<0.000000e+00> : vector<8xf32>
    %121 = vector.multi_reduction <add>, %120, %cst_54 [1] : vector<8x16xf32> to vector<8xf32>
    %122 = vector.shape_cast %121 : vector<8xf32> to vector<8x1xf32>
    %cst_55 = arith.constant 1.600000e+01 : f32
    %123 = vector.broadcast %cst_55 : f32 to vector<8x1xf32>
    %124 = arith.divf %122, %123 : vector<8x1xf32>
    %125 = vector.extract_strided_slice %101 {offsets = [16, 32], sizes = [8, 4], strides = [1, 1]} : vector<24x36xf32> to vector<8x4xf32>
    %126 = arith.subf %125, %14 : vector<8x4xf32>
    %127 = arith.mulf %126, %126 : vector<8x4xf32>
    %cst_56 = arith.constant dense<0.000000e+00> : vector<8xf32>
    %128 = vector.multi_reduction <add>, %127, %cst_56 [1] : vector<8x4xf32> to vector<8xf32>
    %129 = vector.shape_cast %128 : vector<8xf32> to vector<8x1xf32>
    %cst_57 = arith.constant 4.000000e+00 : f32
    %130 = vector.broadcast %cst_57 : f32 to vector<8x1xf32>
    %131 = arith.divf %129, %130 : vector<8x1xf32>
    %132 = arith.addf %108, %124 : vector<8x1xf32>
    %133 = arith.addf %132, %131 : vector<8x1xf32>
    %c368 = arith.constant 368 : index
    %c0_58 = arith.constant 0 : index
    %134 = vector.load %arg2[%c368, %c0_58] : memref<816x192xf32, #tpu.memory_space<vmem>>, vector<32x192xf32>
    %cst_59 = arith.constant dense<0.000000e+00> : vector<8x192xf32>
    %135 = tpu.matmul %75, %134, %cst_59 {dimension_numbers = #tpu.dot_dimension_numbers<[1], [0], [0], [1], [0, 0, 1, 1], [], []>} : vector<8x32xf32>, vector<32x192xf32>, vector<8x192xf32> -> vector<8x192xf32>
    %c400 = arith.constant 400 : index
    %c0_60 = arith.constant 0 : index
    %136 = vector.load %arg2[%c400, %c0_60] : memref<816x192xf32, #tpu.memory_space<vmem>>, vector<16x192xf32>
    %cst_61 = arith.constant dense<0.000000e+00> : vector<8x192xf32>
    %137 = tpu.matmul %13, %136, %cst_61 {dimension_numbers = #tpu.dot_dimension_numbers<[1], [0], [0], [1], [0, 0, 1, 1], [], []>} : vector<8x16xf32>, vector<16x192xf32>, vector<8x192xf32> -> vector<8x192xf32>
    %138 = arith.addf %135, %137 : vector<8x192xf32>
    %c8_62 = arith.constant 8 : index
    %c0_63 = arith.constant 0 : index
    %139 = vector.load %arg1[%c8_62, %c0_63] : memref<15x192xf32, #tpu.memory_space<vmem>>, vector<1x192xf32>
    %140 = vector.broadcast %139 : vector<1x192xf32> to vector<8x192xf32>
    %141 = arith.addf %138, %140 : vector<8x192xf32>
    %142 = vector.extract_strided_slice %141 {offsets = [0, 0], sizes = [8, 128], strides = [1, 1]} : vector<8x192xf32> to vector<8x128xf32>
    %cst_64 = arith.constant 0.000000e+00 : f32
    %143 = vector.broadcast %cst_64 : f32 to vector<8x128xf32>
    %144 = arith.maximumf %142, %143 : vector<8x128xf32>
    %c416 = arith.constant 416 : index
    %c0_65 = arith.constant 0 : index
    %145 = vector.load %arg2[%c416, %c0_65] : memref<816x192xf32, #tpu.memory_space<vmem>>, vector<128x128xf32>
    %cst_66 = arith.constant dense<0.000000e+00> : vector<8x128xf32>
    %146 = tpu.matmul %144, %145, %cst_66 {dimension_numbers = #tpu.dot_dimension_numbers<[1], [0], [0], [1], [0, 0, 1, 1], [], []>} : vector<8x128xf32>, vector<128x128xf32>, vector<8x128xf32> -> vector<8x128xf32>
    %c9 = arith.constant 9 : index
    %c0_67 = arith.constant 0 : index
    %147 = vector.load %arg1[%c9, %c0_67] : memref<15x192xf32, #tpu.memory_space<vmem>>, vector<1x128xf32>
    %148 = vector.broadcast %147 : vector<1x128xf32> to vector<8x128xf32>
    %149 = arith.addf %146, %148 : vector<8x128xf32>
    %cst_68 = arith.constant 0.000000e+00 : f32
    %150 = vector.broadcast %cst_68 : f32 to vector<8x128xf32>
    %151 = arith.maximumf %149, %150 : vector<8x128xf32>
    %c544 = arith.constant 544 : index
    %c0_69 = arith.constant 0 : index
    %152 = vector.load %arg2[%c544, %c0_69] : memref<816x192xf32, #tpu.memory_space<vmem>>, vector<128x5xf32>
    %cst_70 = arith.constant dense<0.000000e+00> : vector<8x5xf32>
    %153 = tpu.matmul %151, %152, %cst_70 {dimension_numbers = #tpu.dot_dimension_numbers<[1], [0], [0], [1], [0, 0, 1, 1], [], []>} : vector<8x128xf32>, vector<128x5xf32>, vector<8x5xf32> -> vector<8x5xf32>
    %c10 = arith.constant 10 : index
    %c0_71 = arith.constant 0 : index
    %154 = vector.load %arg1[%c10, %c0_71] : memref<15x192xf32, #tpu.memory_space<vmem>>, vector<1x5xf32>
    %155 = vector.broadcast %154 : vector<1x5xf32> to vector<8x5xf32>
    %156 = arith.addf %153, %155 : vector<8x5xf32>
    %157 = vector.extract_strided_slice %156 {offsets = [0, 0], sizes = [8, 1], strides = [1, 1]} : vector<8x5xf32> to vector<8x1xf32>
    %158 = vector.extract_strided_slice %156 {offsets = [0, 1], sizes = [8, 4], strides = [1, 1]} : vector<8x5xf32> to vector<8x4xf32>
    %c11 = arith.constant 11 : index
    %c0_72 = arith.constant 0 : index
    %159 = vector.load %arg1[%c11, %c0_72] : memref<15x192xf32, #tpu.memory_space<vmem>>, vector<1x4xf32>
    %160 = math.exp %159 : vector<1x4xf32>
    %c40 = arith.constant 40 : index
    %c0_73 = arith.constant 0 : index
    %161 = vector.load %arg0[%c40, %c0_73] : memref<64x32xf32, #tpu.memory_space<vmem>>, vector<8x4xf32>
    %162 = vector.broadcast %160 : vector<1x4xf32> to vector<8x4xf32>
    %163 = arith.mulf %162, %161 : vector<8x4xf32>
    %164 = arith.addf %158, %163 : vector<8x4xf32>
    %165 = tpu.iota {dimensions = array<i32: 0>} : vector<8x4xi32>
    %c4_i32 = arith.constant 4 : i32
    %166 = vector.broadcast %c4_i32 : i32 to vector<8x4xi32>
    %167 = arith.cmpi slt, %165, %166 : vector<8x4xi32>
    %c32 = arith.constant 32 : index
    %c0_74 = arith.constant 0 : index
    %168 = vector.load %arg0[%c32, %c0_74] : memref<64x32xf32, #tpu.memory_space<vmem>>, vector<8x4xf32>
    %169 = arith.select %167, %164, %168 : vector<8x4xi1>, vector<8x4xf32>
    %170 = arith.subf %164, %158 : vector<8x4xf32>
    %cst_75 = arith.constant -2.000000e+00 : f32
    %171 = vector.broadcast %cst_75 : f32 to vector<1x4xf32>
    %172 = arith.mulf %171, %159 : vector<1x4xf32>
    %173 = math.exp %172 : vector<1x4xf32>
    %cst_76 = arith.constant 5.000000e-01 : f32
    %174 = vector.broadcast %cst_76 : f32 to vector<1x4xf32>
    %175 = arith.mulf %174, %173 : vector<1x4xf32>
    %176 = arith.mulf %170, %170 : vector<8x4xf32>
    %cst_77 = arith.constant 0.000000e+00 : f32
    %177 = vector.broadcast %cst_77 : f32 to vector<8x4xf32>
    %178 = arith.subf %177, %176 : vector<8x4xf32>
    %179 = vector.broadcast %175 : vector<1x4xf32> to vector<8x4xf32>
    %180 = arith.mulf %178, %179 : vector<8x4xf32>
    %181 = vector.broadcast %159 : vector<1x4xf32> to vector<8x4xf32>
    %182 = arith.subf %180, %181 : vector<8x4xf32>
    %cst_78 = arith.constant 6.28318548 : f32
    %183 = math.log %cst_78 : f32
    %cst_79 = arith.constant 5.000000e-01 : f32
    %184 = arith.mulf %cst_79, %183 : f32
    %185 = vector.broadcast %184 : f32 to vector<8x4xf32>
    %186 = arith.subf %182, %185 : vector<8x4xf32>
    %cst_80 = arith.constant dense<0.000000e+00> : vector<8xf32>
    %187 = vector.multi_reduction <add>, %186, %cst_80 [1] : vector<8x4xf32> to vector<8xf32>
    %188 = vector.shape_cast %187 : vector<8xf32> to vector<8x1xf32>
    %c672 = arith.constant 672 : index
    %c0_81 = arith.constant 0 : index
    %189 = vector.load %arg2[%c672, %c0_81] : memref<816x192xf32, #tpu.memory_space<vmem>>, vector<4x8xf32>
    %cst_82 = arith.constant dense<0.000000e+00> : vector<8x8xf32>
    %190 = tpu.matmul %169, %189, %cst_82 {dimension_numbers = #tpu.dot_dimension_numbers<[1], [0], [0], [1], [0, 0, 1, 1], [], []>} : vector<8x4xf32>, vector<4x8xf32>, vector<8x8xf32> -> vector<8x8xf32>
    %c12 = arith.constant 12 : index
    %c0_83 = arith.constant 0 : index
    %191 = vector.load %arg1[%c12, %c0_83] : memref<15x192xf32, #tpu.memory_space<vmem>>, vector<1x8xf32>
    %192 = vector.broadcast %191 : vector<1x8xf32> to vector<8x8xf32>
    %193 = arith.addf %190, %192 : vector<8x8xf32>
    %cst_84 = arith.constant 0.000000e+00 : f32
    %194 = vector.broadcast %cst_84 : f32 to vector<8x8xf32>
    %195 = arith.maximumf %193, %194 : vector<8x8xf32>
    %196 = vector.extract_strided_slice %141 {offsets = [0, 128], sizes = [8, 64], strides = [1, 1]} : vector<8x192xf32> to vector<8x64xf32>
    %c680 = arith.constant 680 : index
    %c0_85 = arith.constant 0 : index
    %197 = vector.load %arg2[%c680, %c0_85] : memref<816x192xf32, #tpu.memory_space<vmem>>, vector<8x64xf32>
    %cst_86 = arith.constant dense<0.000000e+00> : vector<8x64xf32>
    %198 = tpu.matmul %195, %197, %cst_86 {dimension_numbers = #tpu.dot_dimension_numbers<[1], [0], [0], [1], [0, 0, 1, 1], [], []>} : vector<8x8xf32>, vector<8x64xf32>, vector<8x64xf32> -> vector<8x64xf32>
    %199 = arith.addf %196, %198 : vector<8x64xf32>
    %cst_87 = arith.constant 0.000000e+00 : f32
    %200 = vector.broadcast %cst_87 : f32 to vector<8x64xf32>
    %201 = arith.maximumf %199, %200 : vector<8x64xf32>
    %c688 = arith.constant 688 : index
    %c0_88 = arith.constant 0 : index
    %202 = vector.load %arg2[%c688, %c0_88] : memref<816x192xf32, #tpu.memory_space<vmem>>, vector<64x64xf32>
    %cst_89 = arith.constant dense<0.000000e+00> : vector<8x64xf32>
    %203 = tpu.matmul %201, %202, %cst_89 {dimension_numbers = #tpu.dot_dimension_numbers<[1], [0], [0], [1], [0, 0, 1, 1], [], []>} : vector<8x64xf32>, vector<64x64xf32>, vector<8x64xf32> -> vector<8x64xf32>
    %c13 = arith.constant 13 : index
    %c0_90 = arith.constant 0 : index
    %204 = vector.load %arg1[%c13, %c0_90] : memref<15x192xf32, #tpu.memory_space<vmem>>, vector<1x64xf32>
    %205 = vector.broadcast %204 : vector<1x64xf32> to vector<8x64xf32>
    %206 = arith.addf %203, %205 : vector<8x64xf32>
    %cst_91 = arith.constant 0.000000e+00 : f32
    %207 = vector.broadcast %cst_91 : f32 to vector<8x64xf32>
    %208 = arith.maximumf %206, %207 : vector<8x64xf32>
    %c752 = arith.constant 752 : index
    %c0_92 = arith.constant 0 : index
    %209 = vector.load %arg2[%c752, %c0_92] : memref<816x192xf32, #tpu.memory_space<vmem>>, vector<64x1xf32>
    %cst_93 = arith.constant dense<0.000000e+00> : vector<8x1xf32>
    %210 = tpu.matmul %208, %209, %cst_93 {dimension_numbers = #tpu.dot_dimension_numbers<[1], [0], [0], [1], [0, 0, 1, 1], [], []>} : vector<8x64xf32>, vector<64x1xf32>, vector<8x1xf32> -> vector<8x1xf32>
    %c14 = arith.constant 14 : index
    %c0_94 = arith.constant 0 : index
    %211 = vector.load %arg1[%c14, %c0_94] : memref<15x192xf32, #tpu.memory_space<vmem>>, vector<1x1xf32>
    %212 = vector.broadcast %211 : vector<1x1xf32> to vector<8x1xf32>
    %213 = arith.addf %210, %212 : vector<8x1xf32>
    %214 = arith.negf %213 : vector<8x1xf32>
    %215 = math.exp %214 : vector<8x1xf32>
    %cst_95 = arith.constant 1.000000e+00 : f32
    %216 = vector.broadcast %cst_95 : f32 to vector<8x1xf32>
    %217 = arith.addf %216, %215 : vector<8x1xf32>
    %218 = arith.divf %216, %217 : vector<8x1xf32>
    %cst_96 = arith.constant 0.000000e+00 : f32
    %219 = vector.broadcast %cst_96 : f32 to vector<8x88xf32>
    %220 = tpu.concatenate %75, %157, %169, %188, %218, %133, %219 in 1 : vector<8x32xf32>, vector<8x1xf32>, vector<8x4xf32>, vector<8x1xf32>, vector<8x1xf32>, vector<8x1xf32>, vector<8x88xf32> -> vector<8x128xf32>
    %c0_97 = arith.constant 0 : index
    %c0_98 = arith.constant 0 : index
    %221 = vector.load %arg3[%c0_97, %c0_98] : memref<8x128xf32, #tpu.memory_space<vmem>>, vector<8x128xf32>
    tpu.vector_store %arg3[%c0_97, %c0_98], %220 {strides = array<i32>} : memref<8x128xf32, #tpu.memory_space<vmem>>, vector<8x128xf32>,
    return
  }
}

</mosaic_0001>

<llo_original>
// kernel: bmil_forward.1
$region0: #{bmil_forward.1}
  #allocation0 [shape = 'u32[]', space=smem, size = 0x4, offset = 0x4, fixed_abs, tag = 'smem constant byte address 0x4 - core index']
  #allocation1 [shape = 'u32[144,128]{1,0:T(1,128)}', space=vmem, size = 0x12000, scoped, tag = 'internal scratch']
  %s0 = inlined_call_operand.vmem [shape: f32[64,32], index: 0, kind: input, shape index: {}]
  %s1 = inlined_call_operand.vmem [shape: f32[15,192], index: 1, kind: input, shape index: {}]
  %s2 = inlined_call_operand.vmem [shape: f32[816,192], index: 2, kind: input, shape index: {}]
  %s3 = inlined_call_operand.vmem [shape: f32[8,128], index: 3, kind: output, shape index: {}]
  %s4 = sld [smem:[#allocation0]]
  $region22: #{bmil_forward.1} parent=0
    _
  %s6 = ssub.s32 1, %s4
  %s7 = scalar_select 0, %s6, %s4
  // Predicated region
  $region2: #{bmil_forward.1} parent=0 // pred_check
    _
  $region3: #{bmil_forward.1} parent=0 // pred_check_branch
    %9 = sbr.rel (0) target = $region5
  $region4: #{bmil_forward.1} parent=0 // pred_region
    _
  $region5: #{bmil_forward.1} parent=0 // pred_fallthru
    _
  // Predicated region
  $region6: #{bmil_forward.1} parent=0 // pred_check
    _
  $region7: #{bmil_forward.1} parent=0 // pred_check_branch
    %11 = sbr.rel (0) target = $region9
  $region8: #{bmil_forward.1} parent=0 // pred_region
    _
  $region9: #{bmil_forward.1} parent=0 // pred_fallthru
    _
  // Predicated region
  $region10: #{bmil_forward.1} parent=0 // pred_check
    _
  $region11: #{bmil_forward.1} parent=0 // pred_check_branch
    %13 = sbr.rel (0) target = $region13
  $region12: #{bmil_forward.1} parent=0 // pred_region
    _
  $region13: #{bmil_forward.1} parent=0 // pred_fallthru
    _
  %v14 = vld [vmem:[%s0 + $0x30] sm:$0x1]
  %v15 = vld [vmem:[%s0 + $0x38] sm:$0x1]
  %v16 = vadd.f32 %v15, 1e-08
  %v17 = vrsqrt.pop %v16
  %v18 = vld [vmem:[%s0] sm:$0xff]
  %v19 = vlaneseq
  %v20 = vshrl.u32 %v19, 7
  %v21 = vsub.s32 0, %v20
  %v22 = vrot.slane %v14, %v21
  %v23 = vsub.f32 %v18, %v22
  %v24 = vlaneseq
  %v25 = vshrl.u32 %v24, 7
  %v26 = vsub.s32 0, %v25
  %v27 = vrot.slane %v17, %v26
  %v28 = vmul.f32 %v23, %v27
  %v29 = vmax.f32 %v28, -10.0
  %v30 = vmin.f32 %v29, 10.0
  %v31 = vld [vmem:[%s0 + $0x10] sm:$0xff]
  %v32 = vld [vmem:[%s0 + $0x18] sm:$0xff]
  %v33 = vld [vmem:[%s2 + $0x60] sm:$0xf]
  %v34 = vld [vmem:[%s1 + $0x2] ss:$0 sm:$0xff]
  %vm35 = vcmask 31744
  %v37 = vsel %vm35, %v31, 0
  %vm39 = vcmask 1043456
  %v41 = vsel %vm39, %v33, 0
  %43 = vmatprep.subr.mxu0 0.0
  %44 = vmatpush1.msra.mxu0 %v41
  %45 = vmatprep.subr.mxu0 0.0
  %46 = vmatpush1.msra.mxu0 0.0
  %47 = vmatprep.subr.mxu0 0.0
  %48 = vmatpush1.msra.mxu0 0.0
  %49 = vmatprep.subr.mxu0 0.0
  %50 = vmatpush1.msra.mxu0 0.0
  %51 = vmatprep.subr.mxu0 0.0
  %52 = vmatpush1.msra.mxu0 0.0
  %53 = vmatprep.subr.mxu0 0.0
  %54 = vmatpush1.msra.mxu0 0.0
  %55 = vmatprep.subr.mxu0 0.0
  %56 = vmatpush1.msra.mxu0 0.0
  %57 = vmatprep.subr.mxu0 0.0
  %58 = vmatpush1.msra.mxu0 0.0
  %59 = vmatprep.subr.mxu0 0.0
  %60 = vmatpush1.msra.mxu0 0.0
  %61 = vmatprep.subr.mxu0 0.0
  %62 = vmatpush1.msra.mxu0 0.0
  %63 = vmatprep.subr.mxu0 0.0
  %64 = vmatpush1.msra.mxu0 0.0
  %65 = vmatprep.subr.mxu0 0.0
  %66 = vmatpush1.msra.mxu0 0.0
  %67 = vmatprep.subr.mxu0 0.0
  %68 = vmatpush1.msra.mxu0 0.0
  %69 = vmatprep.subr.mxu0 0.0
  %70 = vmatpush1.msra.mxu0 0.0
  %71 = vmatprep.subr.mxu0 0.0
  %72 = vmatpush1.msra.mxu0 0.0
  %73 = vmatprep.subr.mxu0 0.0
  %74 = vmatpush1.msra.mxu0 0.0
  %75 = vmatprep.subr.mxu0 0.0
  %76 = vmatpush1.msra.mxu0 0.0
  %77 = vmatprep.subr.mxu0 0.0
  %78 = vmatpush1.msra.mxu0 0.0
  %79 = vmatprep.subr.mxu0 0.0
  %80 = vmatpush1.msra.mxu0 0.0
  %81 = vmatprep.subr.mxu0 0.0
  %82 = vmatpush1.msra.mxu0 0.0
  %83 = vmatprep.subr.mxu0 0.0
  %84 = vmatpush1.msra.mxu0 0.0
  %85 = vmatprep.subr.mxu0 0.0
  %86 = vmatpush1.msra.mxu0 0.0
  %87 = vmatprep.subr.mxu0 0.0
  %88 = vmatpush1.msra.mxu0 0.0
  %89 = vmatprep.subr.mxu0 0.0
  %90 = vmatpush1.msra.mxu0 0.0
  %91 = vmatprep.subr.mxu0 0.0
  %92 = vmatpush1.msra.mxu0 0.0
  %93 = vmatprep.subr.mxu0 0.0
  %94 = vmatpush1.msra.mxu0 0.0
  %95 = vmatprep.subr.mxu0 0.0
  %96 = vmatpush1.msra.mxu0 0.0
  %97 = vmatprep.subr.mxu0 0.0
  %98 = vmatpush1.msra.mxu0 0.0
  %99 = vmatprep.subr.mxu0 0.0
  %100 = vmatpush1.msra.mxu0 0.0
  %101 = vmatprep.subr.mxu0 0.0
  %102 = vmatpush1.msra.mxu0 0.0
  %103 = vmatprep.subr.mxu0 0.0
  %104 = vmatpush1.msra.mxu0 0.0
  %105 = vmatprep.subr.mxu0 0.0
  %106 = vmatpush1.msra.mxu0 0.0
  %107 = vmatprep.mubr.f32.mxu0 0.0
  %108 = vmatmul.mubr.f32.gmra.mrb[0].mxu0 %v37
  %v109 = vpop.f32.mrb[0].mxu0
  %v110 = vadd.f32 %v34, %v109
  %v111 = vpop.f32.mrb[0].mxu0
  %112 = vdwg.mxu0
  %v113 = vmax.f32 %v110, 0.0
  %v114 = vld [vmem:[%s2] sm:$0xff]
  %v115 = vld [vmem:[%s2 + $0x10] sm:$0xff]
  %v116 = vld [vmem:[%s1] ss:$0 sm:$0xff]
  %vm117 = vcmask 130048
  %v119 = vsel %vm117, %v30, 0
  %121 = vmatprep.subr.mxu0 0.0
  %122 = vmatpush1.msra.mxu0 %v114
  %123 = vmatprep.subr.mxu0 0.0
  %124 = vmatpush1.msra.mxu0 %v115
  %125 = vmatprep.subr.mxu0 0.0
  %126 = vmatpush1.msra.mxu0 0.0
  %127 = vmatprep.subr.mxu0 0.0
  %128 = vmatpush1.msra.mxu0 0.0
  %129 = vmatprep.subr.mxu0 0.0
  %130 = vmatpush1.msra.mxu0 0.0
  %131 = vmatprep.subr.mxu0 0.0
  %132 = vmatpush1.msra.mxu0 0.0
  %133 = vmatprep.subr.mxu0 0.0
  %134 = vmatpush1.msra.mxu0 0.0
  %135 = vmatprep.subr.mxu0 0.0
  %136 = vmatpush1.msra.mxu0 0.0
  %137 = vmatprep.subr.mxu0 0.0
  %138 = vmatpush1.msra.mxu0 0.0
  %139 = vmatprep.subr.mxu0 0.0
  %140 = vmatpush1.msra.mxu0 0.0
  %141 = vmatprep.subr.mxu0 0.0
  %142 = vmatpush1.msra.mxu0 0.0
  %143 = vmatprep.subr.mxu0 0.0
  %144 = vmatpush1.msra.mxu0 0.0
  %145 = vmatprep.subr.mxu0 0.0
  %146 = vmatpush1.msra.mxu0 0.0
  %147 = vmatprep.subr.mxu0 0.0
  %148 = vmatpush1.msra.mxu0 0.0
  %149 = vmatprep.subr.mxu0 0.0
  %150 = vmatpush1.msra.mxu0 0.0
  %151 = vmatprep.subr.mxu0 0.0
  %152 = vmatpush1.msra.mxu0 0.0
  %153 = vmatprep.subr.mxu0 0.0
  %154 = vmatpush1.msra.mxu0 0.0
  %155 = vmatprep.subr.mxu0 0.0
  %156 = vmatpush1.msra.mxu0 0.0
  %157 = vmatprep.subr.mxu0 0.0
  %158 = vmatpush1.msra.mxu0 0.0
  %159 = vmatprep.subr.mxu0 0.0
  %160 = vmatpush1.msra.mxu0 0.0
  %161 = vmatprep.subr.mxu0 0.0
  %162 = vmatpush1.msra.mxu0 0.0
  %163 = vmatprep.subr.mxu0 0.0
  %164 = vmatpush1.msra.mxu0 0.0
  %165 = vmatprep.subr.mxu0 0.0
  %166 = vmatpush1.msra.mxu0 0.0
  %167 = vmatprep.subr.mxu0 0.0
  %168 = vmatpush1.msra.mxu0 0.0
  %169 = vmatprep.subr.mxu0 0.0
  %170 = vmatpush1.msra.mxu0 0.0
  %171 = vmatprep.subr.mxu0 0.0
  %172 = vmatpush1.msra.mxu0 0.0
  %173 = vmatprep.subr.mxu0 0.0
  %174 = vmatpush1.msra.mxu0 0.0
  %175 = vmatprep.subr.mxu0 0.0
  %176 = vmatpush1.msra.mxu0 0.0
  %177 = vmatprep.subr.mxu0 0.0
  %178 = vmatpush1.msra.mxu0 0.0
  %179 = vmatprep.subr.mxu0 0.0
  %180 = vmatpush1.msra.mxu0 0.0
  %181 = vmatprep.subr.mxu0 0.0
  %182 = vmatpush1.msra.mxu0 0.0
  %183 = vmatprep.subr.mxu0 0.0
  %184 = vmatpush1.msra.mxu0 0.0
  %185 = vmatprep.mubr.f32.mxu0 0.0
  %186 = vmatmul.mubr.f32.gmra.mrb[0].mxu0 %v119
  %v187 = vpop.f32.mrb[0].mxu0
  %v188 = vadd.f32 %v116, %v187
  %v189 = vpop.f32.mrb[0].mxu0
  %190 = vdwg.mxu0
  %v191 = vmax.f32 %v188, 0.0
  %v192 = vld [vmem:[%s2 + $0x20] sm:$0xff]
  %v193 = vld [vmem:[%s2 + $0x30] sm:$0xff]
  %v194 = vld [vmem:[%s2 + $0x40] sm:$0xff]
  %v195 = vld [vmem:[%s2 + $0x50] sm:$0xff]
  %v196 = vld [vmem:[%s1 + $0x1] ss:$0 sm:$0xff]
  %vm197 = vcmask 261120
  %v199 = vsel %vm197, %v191, 0
  %201 = vmatprep.subr.mxu0 0.0
  %202 = vmatpush1.msra.mxu0 %v192
  %203 = vmatprep.subr.mxu0 0.0
  %204 = vmatpush1.msra.mxu0 %v193
  %205 = vmatprep.subr.mxu0 0.0
  %206 = vmatpush1.msra.mxu0 %v194
  %207 = vmatprep.subr.mxu0 0.0
  %208 = vmatpush1.msra.mxu0 %v195
  %209 = vmatprep.subr.mxu0 0.0
  %210 = vmatpush1.msra.mxu0 0.0
  %211 = vmatprep.subr.mxu0 0.0
  %212 = vmatpush1.msra.mxu0 0.0
  %213 = vmatprep.subr.mxu0 0.0
  %214 = vmatpush1.msra.mxu0 0.0
  %215 = vmatprep.subr.mxu0 0.0
  %216 = vmatpush1.msra.mxu0 0.0
  %217 = vmatprep.subr.mxu0 0.0
  %218 = vmatpush1.msra.mxu0 0.0
  %219 = vmatprep.subr.mxu0 0.0
  %220 = vmatpush1.msra.mxu0 0.0
  %221 = vmatprep.subr.mxu0 0.0
  %222 = vmatpush1.msra.mxu0 0.0
  %223 = vmatprep.subr.mxu0 0.0
  %224 = vmatpush1.msra.mxu0 0.0
  %225 = vmatprep.subr.mxu0 0.0
  %226 = vmatpush1.msra.mxu0 0.0
  %227 = vmatprep.subr.mxu0 0.0
  %228 = vmatpush1.msra.mxu0 0.0
  %229 = vmatprep.subr.mxu0 0.0
  %230 = vmatpush1.msra.mxu0 0.0
  %231 = vmatprep.subr.mxu0 0.0
  %232 = vmatpush1.msra.mxu0 0.0
  %233 = vmatprep.subr.mxu0 0.0
  %234 = vmatpush1.msra.mxu0 0.0
  %235 = vmatprep.subr.mxu0 0.0
  %236 = vmatpush1.msra.mxu0 0.0
  %237 = vmatprep.subr.mxu0 0.0
  %238 = vmatpush1.msra.mxu0 0.0
  %239 = vmatprep.subr.mxu0 0.0
  %240 = vmatpush1.msra.mxu0 0.0
  %241 = vmatprep.subr.mxu0 0.0
  %242 = vmatpush1.msra.mxu0 0.0
  %243 = vmatprep.subr.mxu0 0.0
  %244 = vmatpush1.msra.mxu0 0.0
  %245 = vmatprep.subr.mxu0 0.0
  %246 = vmatpush1.msra.mxu0 0.0
  %247 = vmatprep.subr.mxu0 0.0
  %248 = vmatpush1.msra.mxu0 0.0
  %249 = vmatprep.subr.mxu0 0.0
  %250 = vmatpush1.msra.mxu0 0.0
  %251 = vmatprep.subr.mxu0 0.0
  %252 = vmatpush1.msra.mxu0 0.0
  %253 = vmatprep.subr.mxu0 0.0
  %254 = vmatpush1.msra.mxu0 0.0
  %255 = vmatprep.subr.mxu0 0.0
  %256 = vmatpush1.msra.mxu0 0.0
  %257 = vmatprep.subr.mxu0 0.0
  %258 = vmatpush1.msra.mxu0 0.0
  %259 = vmatprep.subr.mxu0 0.0
  %260 = vmatpush1.msra.mxu0 0.0
  %261 = vmatprep.subr.mxu0 0.0
  %262 = vmatpush1.msra.mxu0 0.0
  %263 = vmatprep.subr.mxu0 0.0
  %264 = vmatpush1.msra.mxu0 0.0
  %265 = vmatprep.mubr.f32.mxu0 0.0
  %266 = vmatmul.mubr.f32.gmra.mrb[0].mxu0 %v199
  %v267 = vpop.f32.mrb[0].mxu0
  %v268 = vadd.f32 %v196, %v267
  %v269 = vpop.f32.mrb[0].mxu0
  %270 = vdwg.mxu0
  %v271 = vmax.f32 %v268, 0.0
  %v272 = vld [vmem:[%s2 + $0x70] sm:$0xff]
  %v273 = vld [vmem:[%s2 + $0x80] sm:$0xff]
  %v274 = vld [vmem:[%s2 + $0x90] sm:$0xff]
  %v275 = vld [vmem:[%s2 + $0xa0] sm:$0xff]
  %v276 = vld [vmem:[%s2 + $0xb0] sm:$0xff]
  %vm277 = vcmask 64512
  %v279 = vsel %vm277, %v113, 0
  %281 = vmatprep.subr.mxu0 0.0
  %282 = vmatpush1.msra.mxu0 %v276
  %283 = vmatprep.subr.mxu0 0.0
  %284 = vmatpush1.msra.mxu0 0.0
  %285 = vmatprep.subr.mxu0 0.0
  %286 = vmatpush1.msra.mxu0 0.0
  %287 = vmatprep.subr.mxu0 0.0
  %288 = vmatpush1.msra.mxu0 0.0
  %289 = vmatprep.subr.mxu0 0.0
  %290 = vmatpush1.msra.mxu0 0.0
  %291 = vmatprep.subr.mxu0 0.0
  %292 = vmatpush1.msra.mxu0 0.0
  %293 = vmatprep.subr.mxu0 0.0
  %294 = vmatpush1.msra.mxu0 0.0
  %295 = vmatprep.subr.mxu0 0.0
  %296 = vmatpush1.msra.mxu0 0.0
  %297 = vmatprep.subr.mxu0 0.0
  %298 = vmatpush1.msra.mxu0 0.0
  %299 = vmatprep.subr.mxu0 0.0
  %300 = vmatpush1.msra.mxu0 0.0
  %301 = vmatprep.subr.mxu0 0.0
  %302 = vmatpush1.msra.mxu0 0.0
  %303 = vmatprep.subr.mxu0 0.0
  %304 = vmatpush1.msra.mxu0 0.0
  %305 = vmatprep.subr.mxu0 0.0
  %306 = vmatpush1.msra.mxu0 0.0
  %307 = vmatprep.subr.mxu0 0.0
  %308 = vmatpush1.msra.mxu0 0.0
  %309 = vmatprep.subr.mxu0 0.0
  %310 = vmatpush1.msra.mxu0 0.0
  %311 = vmatprep.subr.mxu0 0.0
  %312 = vmatpush1.msra.mxu0 0.0
  %313 = vmatprep.subr.mxu0 0.0
  %314 = vmatpush1.msra.mxu0 0.0
  %315 = vmatprep.subr.mxu0 0.0
  %316 = vmatpush1.msra.mxu0 0.0
  %317 = vmatprep.subr.mxu0 0.0
  %318 = vmatpush1.msra.mxu0 0.0
  %319 = vmatprep.subr.mxu0 0.0
  %320 = vmatpush1.msra.mxu0 0.0
  %321 = vmatprep.subr.mxu0 0.0
  %322 = vmatpush1.msra.mxu0 0.0
  %323 = vmatprep.subr.mxu0 0.0
  %324 = vmatpush1.msra.mxu0 0.0
  %325 = vmatprep.subr.mxu0 0.0
  %326 = vmatpush1.msra.mxu0 0.0
  %327 = vmatprep.subr.mxu0 0.0
  %328 = vmatpush1.msra.mxu0 0.0
  %329 = vmatprep.subr.mxu0 0.0
  %330 = vmatpush1.msra.mxu0 0.0
  %331 = vmatprep.subr.mxu0 0.0
  %332 = vmatpush1.msra.mxu0 0.0
  %333 = vmatprep.subr.mxu0 0.0
  %334 = vmatpush1.msra.mxu0 0.0
  %335 = vmatprep.subr.mxu0 0.0
  %336 = vmatpush1.msra.mxu0 0.0
  %337 = vmatprep.subr.mxu0 0.0
  %338 = vmatpush1.msra.mxu0 0.0
  %339 = vmatprep.subr.mxu0 0.0
  %340 = vmatpush1.msra.mxu0 0.0
  %341 = vmatprep.subr.mxu0 0.0
  %342 = vmatpush1.msra.mxu0 0.0
  %343 = vmatprep.subr.mxu0 0.0
  %344 = vmatpush1.msra.mxu0 0.0
  %345 = vmatprep.mubr.f32.mxu0 0.0
  %346 = vmatmul.mubr.f32.gmra.mrb[0].mxu0 %v279
  %v347 = vpop.f32.mrb[0].mxu0
  %v348 = vadd.f32 0.0, %v347
  %v349 = vpop.f32.mrb[0].mxu0
  %350 = vdwg.mxu0
  %v352 = vsel %vm197, %v271, 0
  %354 = vmatprep.subr.mxu0 0.0
  %355 = vmatpush1.msra.mxu0 %v272
  %356 = vmatprep.subr.mxu0 0.0
  %357 = vmatpush1.msra.mxu0 %v273
  %358 = vmatprep.subr.mxu0 0.0
  %359 = vmatpush1.msra.mxu0 %v274
  %360 = vmatprep.subr.mxu0 0.0
  %361 = vmatpush1.msra.mxu0 %v275
  %362 = vmatprep.subr.mxu0 0.0
  %363 = vmatpush1.msra.mxu0 0.0
  %364 = vmatprep.subr.mxu0 0.0
  %365 = vmatpush1.msra.mxu0 0.0
  %366 = vmatprep.subr.mxu0 0.0
  %367 = vmatpush1.msra.mxu0 0.0
  %368 = vmatprep.subr.mxu0 0.0
  %369 = vmatpush1.msra.mxu0 0.0
  %370 = vmatprep.subr.mxu0 0.0
  %371 = vmatpush1.msra.mxu0 0.0
  %372 = vmatprep.subr.mxu0 0.0
  %373 = vmatpush1.msra.mxu0 0.0
  %374 = vmatprep.subr.mxu0 0.0
  %375 = vmatpush1.msra.mxu0 0.0
  %376 = vmatprep.subr.mxu0 0.0
  %377 = vmatpush1.msra.mxu0 0.0
  %378 = vmatprep.subr.mxu0 0.0
  %379 = vmatpush1.msra.mxu0 0.0
  %380 = vmatprep.subr.mxu0 0.0
  %381 = vmatpush1.msra.mxu0 0.0
  %382 = vmatprep.subr.mxu0 0.0
  %383 = vmatpush1.msra.mxu0 0.0
  %384 = vmatprep.subr.mxu0 0.0
  %385 = vmatpush1.msra.mxu0 0.0
  %386 = vmatprep.subr.mxu0 0.0
  %387 = vmatpush1.msra.mxu0 0.0
  %388 = vmatprep.subr.mxu0 0.0
  %389 = vmatpush1.msra.mxu0 0.0
  %390 = vmatprep.subr.mxu0 0.0
  %391 = vmatpush1.msra.mxu0 0.0
  %392 = vmatprep.subr.mxu0 0.0
  %393 = vmatpush1.msra.mxu0 0.0
  %394 = vmatprep.subr.mxu0 0.0
  %395 = vmatpush1.msra.mxu0 0.0
  %396 = vmatprep.subr.mxu0 0.0
  %397 = vmatpush1.msra.mxu0 0.0
  %398 = vmatprep.subr.mxu0 0.0
  %399 = vmatpush1.msra.mxu0 0.0
  %400 = vmatprep.subr.mxu0 0.0
  %401 = vmatpush1.msra.mxu0 0.0
  %402 = vmatprep.subr.mxu0 0.0
  %403 = vmatpush1.msra.mxu0 0.0
  %404 = vmatprep.subr.mxu0 0.0
  %405 = vmatpush1.msra.mxu0 0.0
  %406 = vmatprep.subr.mxu0 0.0
  %407 = vmatpush1.msra.mxu0 0.0
  %408 = vmatprep.subr.mxu0 0.0
  %409 = vmatpush1.msra.mxu0 0.0
  %410 = vmatprep.subr.mxu0 0.0
  %411 = vmatpush1.msra.mxu0 0.0
  %412 = vmatprep.subr.mxu0 0.0
  %413 = vmatpush1.msra.mxu0 0.0
  %414 = vmatprep.subr.mxu0 0.0
  %415 = vmatpush1.msra.mxu0 0.0
  %416 = vmatprep.subr.mxu0 0.0
  %417 = vmatpush1.msra.mxu0 0.0
  %418 = vmatprep.mubr.f32.mxu0 0.0
  %419 = vmatmul.mubr.f32.gmra.mrb[0].mxu0 %v352
  %v420 = vpop.f32.mrb[0].mxu0
  %v421 = vadd.f32 %v348, %v420
  %v422 = vpop.f32.mrb[0].mxu0
  %423 = vdwg.mxu0
  %v424 = vld [vmem:[%s1 + $0x3] ss:$0 sm:$0xff]
  %v425 = vadd.f32 %v421, %v424
  %v426 = vld [vmem:[%s2 + $0xc0] sm:$0xff]
  %v427 = vld [vmem:[%s2 + $0xd0] sm:$0xff]
  %v428 = vld [vmem:[%s2 + $0xe0] sm:$0xff]
  %v429 = vld [vmem:[%s2 + $0xf0] sm:$0xff]
  %v430 = vld [vmem:[%s1 + $0x4] ss:$0 sm:$0xff]
  %v432 = vsel %vm197, %v32, 0
  %434 = vmatprep.subr.mxu0 0.0
  %435 = vmatpush1.msra.mxu0 %v426
  %436 = vmatprep.subr.mxu0 0.0
  %437 = vmatpush1.msra.mxu0 %v427
  %438 = vmatprep.subr.mxu0 0.0
  %439 = vmatpush1.msra.mxu0 %v428
  %440 = vmatprep.subr.mxu0 0.0
  %441 = vmatpush1.msra.mxu0 %v429
  %442 = vmatprep.subr.mxu0 0.0
  %443 = vmatpush1.msra.mxu0 0.0
  %444 = vmatprep.subr.mxu0 0.0
  %445 = vmatpush1.msra.mxu0 0.0
  %446 = vmatprep.subr.mxu0 0.0
  %447 = vmatpush1.msra.mxu0 0.0
  %448 = vmatprep.subr.mxu0 0.0
  %449 = vmatpush1.msra.mxu0 0.0
  %450 = vmatprep.subr.mxu0 0.0
  %451 = vmatpush1.msra.mxu0 0.0
  %452 = vmatprep.subr.mxu0 0.0
  %453 = vmatpush1.msra.mxu0 0.0
  %454 = vmatprep.subr.mxu0 0.0
  %455 = vmatpush1.msra.mxu0 0.0
  %456 = vmatprep.subr.mxu0 0.0
  %457 = vmatpush1.msra.mxu0 0.0
  %458 = vmatprep.subr.mxu0 0.0
  %459 = vmatpush1.msra.mxu0 0.0
  %460 = vmatprep.subr.mxu0 0.0
  %461 = vmatpush1.msra.mxu0 0.0
  %462 = vmatprep.subr.mxu0 0.0
  %463 = vmatpush1.msra.mxu0 0.0
  %464 = vmatprep.subr.mxu0 0.0
  %465 = vmatpush1.msra.mxu0 0.0
  %466 = vmatprep.subr.mxu0 0.0
  %467 = vmatpush1.msra.mxu0 0.0
  %468 = vmatprep.subr.mxu0 0.0
  %469 = vmatpush1.msra.mxu0 0.0
  %470 = vmatprep.subr.mxu0 0.0
  %471 = vmatpush1.msra.mxu0 0.0
  %472 = vmatprep.subr.mxu0 0.0
  %473 = vmatpush1.msra.mxu0 0.0
  %474 = vmatprep.subr.mxu0 0.0
  %475 = vmatpush1.msra.mxu0 0.0
  %476 = vmatprep.subr.mxu0 0.0
  %477 = vmatpush1.msra.mxu0 0.0
  %478 = vmatprep.subr.mxu0 0.0
  %479 = vmatpush1.msra.mxu0 0.0
  %480 = vmatprep.subr.mxu0 0.0
  %481 = vmatpush1.msra.mxu0 0.0
  %482 = vmatprep.subr.mxu0 0.0
  %483 = vmatpush1.msra.mxu0 0.0
  %484 = vmatprep.subr.mxu0 0.0
  %485 = vmatpush1.msra.mxu0 0.0
  %486 = vmatprep.subr.mxu0 0.0
  %487 = vmatpush1.msra.mxu0 0.0
  %488 = vmatprep.subr.mxu0 0.0
  %489 = vmatpush1.msra.mxu0 0.0
  %490 = vmatprep.subr.mxu0 0.0
  %491 = vmatpush1.msra.mxu0 0.0
  %492 = vmatprep.subr.mxu0 0.0
  %493 = vmatpush1.msra.mxu0 0.0
  %494 = vmatprep.subr.mxu0 0.0
  %495 = vmatpush1.msra.mxu0 0.0
  %496 = vmatprep.subr.mxu0 0.0
  %497 = vmatpush1.msra.mxu0 0.0
  %498 = vmatprep.mubr.f32.mxu0 0.0
  %499 = vmatmul.mubr.f32.gmra.mrb[0].mxu0 %v432
  %v500 = vpop.f32.mrb[0].mxu0
  %v501 = vadd.f32 %v430, %v500
  %v502 = vpop.f32.mrb[0].mxu0
  %503 = vdwg.mxu0
  %v504 = vadd.f32 %v425, %v501
  %v505 = vxor.u32 %v504, 2147483648
  %v506 = vmul.f32 %v505, 1.442695
  %v507 = vpow.pop %v506
  %v508 = vadd.f32 %v507, 1.0
  %v509 = vrcp.pop %v508
  %v510 = vmul.f32 1.0, %v509
  %512 = vrot.lane.b32.xlu0 %v501, 64
  %v513 = vpop.permute.xlu0 %512
  %v515 = vmul.f32 %v510, %v513
  %517 = vrot.lane.b32.xlu0 %v515, 64
  %v518 = vpop.permute.xlu0 %517
  %v520 = vadd.f32 %v425, %v518
  %v521 = vtanh.pop %v520
  %v522 = vsub.f32 1.0, %v510
  %524 = vrot.lane.b32.xlu0 %v521, 96
  %v525 = vpop.permute.xlu0 %524
  %v527 = vmul.f32 %v522, %v525
  %528 = vrot.lane.b32.xlu0 %v32, 32
  %v529 = vpop.permute.xlu0 %528
  %v531 = vmul.f32 %v510, %v529
  %v532 = vadd.f32 %v527, %v531
  %534 = vrot.lane.b32.xlu0 %v532, 96
  %v535 = vpop.permute.xlu0 %534
  %v536 = vsel %vm277, %v113, 0.0
  %v537 = vld [vmem:[%s2 + $0x100] sm:$0xff]
  %v538 = vld [vmem:[%s2 + $0x110] sm:$0xff]
  %v539 = vld [vmem:[%s2 + $0x120] sm:$0xff]
  %v540 = vld [vmem:[%s2 + $0x130] sm:$0xff]
  %v541 = vld [vmem:[%s2 + $0x140] sm:$0xff]
  %v542 = vld [vmem:[%s2 + $0x150] sm:$0xff]
  %v544 = vsel %vm117, %v536, 0
  %546 = vmatprep.subr.mxu0 0.0
  %547 = vmatpush1.msra.mxu0 %v541
  %548 = vmatprep.subr.mxu0 0.0
  %549 = vmatpush1.msra.mxu0 %v542
  %550 = vmatprep.subr.mxu0 0.0
  %551 = vmatpush1.msra.mxu0 0.0
  %552 = vmatprep.subr.mxu0 0.0
  %553 = vmatpush1.msra.mxu0 0.0
  %554 = vmatprep.subr.mxu0 0.0
  %555 = vmatpush1.msra.mxu0 0.0
  %556 = vmatprep.subr.mxu0 0.0
  %557 = vmatpush1.msra.mxu0 0.0
  %558 = vmatprep.subr.mxu0 0.0
  %559 = vmatpush1.msra.mxu0 0.0
  %560 = vmatprep.subr.mxu0 0.0
  %561 = vmatpush1.msra.mxu0 0.0
  %562 = vmatprep.subr.mxu0 0.0
  %563 = vmatpush1.msra.mxu0 0.0
  %564 = vmatprep.subr.mxu0 0.0
  %565 = vmatpush1.msra.mxu0 0.0
  %566 = vmatprep.subr.mxu0 0.0
  %567 = vmatpush1.msra.mxu0 0.0
  %568 = vmatprep.subr.mxu0 0.0
  %569 = vmatpush1.msra.mxu0 0.0
  %570 = vmatprep.subr.mxu0 0.0
  %571 = vmatpush1.msra.mxu0 0.0
  %572 = vmatprep.subr.mxu0 0.0
  %573 = vmatpush1.msra.mxu0 0.0
  %574 = vmatprep.subr.mxu0 0.0
  %575 = vmatpush1.msra.mxu0 0.0
  %576 = vmatprep.subr.mxu0 0.0
  %577 = vmatpush1.msra.mxu0 0.0
  %578 = vmatprep.subr.mxu0 0.0
  %579 = vmatpush1.msra.mxu0 0.0
  %580 = vmatprep.subr.mxu0 0.0
  %581 = vmatpush1.msra.mxu0 0.0
  %582 = vmatprep.subr.mxu0 0.0
  %583 = vmatpush1.msra.mxu0 0.0
  %584 = vmatprep.subr.mxu0 0.0
  %585 = vmatpush1.msra.mxu0 0.0
  %586 = vmatprep.subr.mxu0 0.0
  %587 = vmatpush1.msra.mxu0 0.0
  %588 = vmatprep.subr.mxu0 0.0
  %589 = vmatpush1.msra.mxu0 0.0
  %590 = vmatprep.subr.mxu0 0.0
  %591 = vmatpush1.msra.mxu0 0.0
  %592 = vmatprep.subr.mxu0 0.0
  %593 = vmatpush1.msra.mxu0 0.0
  %594 = vmatprep.subr.mxu0 0.0
  %595 = vmatpush1.msra.mxu0 0.0
  %596 = vmatprep.subr.mxu0 0.0
  %597 = vmatpush1.msra.mxu0 0.0
  %598 = vmatprep.subr.mxu0 0.0
  %599 = vmatpush1.msra.mxu0 0.0
  %600 = vmatprep.subr.mxu0 0.0
  %601 = vmatpush1.msra.mxu0 0.0
  %602 = vmatprep.subr.mxu0 0.0
  %603 = vmatpush1.msra.mxu0 0.0
  %604 = vmatprep.subr.mxu0 0.0
  %605 = vmatpush1.msra.mxu0 0.0
  %606 = vmatprep.subr.mxu0 0.0
  %607 = vmatpush1.msra.mxu0 0.0
  %608 = vmatprep.subr.mxu0 0.0
  %609 = vmatpush1.msra.mxu0 0.0
  %610 = vmatprep.mubr.f32.mxu0 0.0
  %611 = vmatmul.mubr.f32.gmra.mrb[0].mxu0 %v544
  %v612 = vpop.f32.mrb[0].mxu0
  %v613 = vadd.f32 0.0, %v612
  %v614 = vpop.f32.mrb[0].mxu0
  %615 = vmatprep.mubr.f32.mxu0 0.0
  %616 = vmatmul.mubr.f32.gmra.mrb[0].mxu0 %v544
  %v617 = vpop.f32.mrb[0].mxu0
  %v618 = vadd.f32 0.0, %v617
  %v619 = vpop.f32.mrb[0].mxu0
  %620 = vmatprep.mubr.f32.mxu0 0.0
  %621 = vmatmul.mubr.f32.gmra.mrb[0].mxu0 %v119
  %v622 = vpop.f32.mrb[0].mxu0
  %v623 = vadd.f32 0.0, %v622
  %v624 = vpop.f32.mrb[0].mxu0
  %625 = vdwg.mxu0
  %v626 = vsel %vm197, %v535, 0
  %628 = vmatprep.subr.mxu0 0.0
  %629 = vmatpush1.msra.mxu0 %v537
  %630 = vmatprep.subr.mxu0 0.0
  %631 = vmatpush1.msra.mxu0 %v538
  %632 = vmatprep.subr.mxu0 0.0
  %633 = vmatpush1.msra.mxu0 %v539
  %634 = vmatprep.subr.mxu0 0.0
  %635 = vmatpush1.msra.mxu0 %v540
  %636 = vmatprep.subr.mxu0 0.0
  %637 = vmatpush1.msra.mxu0 0.0
  %638 = vmatprep.subr.mxu0 0.0
  %639 = vmatpush1.msra.mxu0 0.0
  %640 = vmatprep.subr.mxu0 0.0
  %641 = vmatpush1.msra.mxu0 0.0
  %642 = vmatprep.subr.mxu0 0.0
  %643 = vmatpush1.msra.mxu0 0.0
  %644 = vmatprep.subr.mxu0 0.0
  %645 = vmatpush1.msra.mxu0 0.0
  %646 = vmatprep.subr.mxu0 0.0
  %647 = vmatpush1.msra.mxu0 0.0
  %648 = vmatprep.subr.mxu0 0.0
  %649 = vmatpush1.msra.mxu0 0.0
  %650 = vmatprep.subr.mxu0 0.0
  %651 = vmatpush1.msra.mxu0 0.0
  %652 = vmatprep.subr.mxu0 0.0
  %653 = vmatpush1.msra.mxu0 0.0
  %654 = vmatprep.subr.mxu0 0.0
  %655 = vmatpush1.msra.mxu0 0.0
  %656 = vmatprep.subr.mxu0 0.0
  %657 = vmatpush1.msra.mxu0 0.0
  %658 = vmatprep.subr.mxu0 0.0
  %659 = vmatpush1.msra.mxu0 0.0
  %660 = vmatprep.subr.mxu0 0.0
  %661 = vmatpush1.msra.mxu0 0.0
  %662 = vmatprep.subr.mxu0 0.0
  %663 = vmatpush1.msra.mxu0 0.0
  %664 = vmatprep.subr.mxu0 0.0
  %665 = vmatpush1.msra.mxu0 0.0
  %666 = vmatprep.subr.mxu0 0.0
  %667 = vmatpush1.msra.mxu0 0.0
  %668 = vmatprep.subr.mxu0 0.0
  %669 = vmatpush1.msra.mxu0 0.0
  %670 = vmatprep.subr.mxu0 0.0
  %671 = vmatpush1.msra.mxu0 0.0
  %672 = vmatprep.subr.mxu0 0.0
  %673 = vmatpush1.msra.mxu0 0.0
  %674 = vmatprep.subr.mxu0 0.0
  %675 = vmatpush1.msra.mxu0 0.0
  %676 = vmatprep.subr.mxu0 0.0
  %677 = vmatpush1.msra.mxu0 0.0
  %678 = vmatprep.subr.mxu0 0.0
  %679 = vmatpush1.msra.mxu0 0.0
  %680 = vmatprep.subr.mxu0 0.0
  %681 = vmatpush1.msra.mxu0 0.0
  %682 = vmatprep.subr.mxu0 0.0
  %683 = vmatpush1.msra.mxu0 0.0
  %684 = vmatprep.subr.mxu0 0.0
  %685 = vmatpush1.msra.mxu0 0.0
  %686 = vmatprep.subr.mxu0 0.0
  %687 = vmatpush1.msra.mxu0 0.0
  %688 = vmatprep.subr.mxu0 0.0
  %689 = vmatpush1.msra.mxu0 0.0
  %690 = vmatprep.subr.mxu0 0.0
  %691 = vmatpush1.msra.mxu0 0.0
  %692 = vmatprep.mubr.f32.mxu0 0.0
  %693 = vmatmul.mubr.f32.gmra.mrb[0].mxu0 %v432
  %v694 = vpop.f32.mrb[0].mxu0
  %v695 = vadd.f32 %v613, %v694
  %v696 = vpop.f32.mrb[0].mxu0
  %697 = vmatprep.mubr.f32.mxu0 0.0
  %698 = vmatmul.mubr.f32.gmra.mrb[0].mxu0 %v626
  %v699 = vpop.f32.mrb[0].mxu0
  %v700 = vadd.f32 %v618, %v699
  %v701 = vpop.f32.mrb[0].mxu0
  %702 = vmatprep.mubr.f32.mxu0 0.0
  %703 = vmatmul.mubr.f32.gmra.mrb[0].mxu0 %v432
  %v704 = vpop.f32.mrb[0].mxu0
  %v705 = vadd.f32 %v623, %v704
  %v706 = vpop.f32.mrb[0].mxu0
  %707 = vdwg.mxu0
  %v708 = vld [vmem:[%s1 + $0x5] ss:$0 sm:$0xff]
  %v709 = vadd.f32 %v695, %v708
  %v710 = vadd.f32 %v700, %v708
  %v711 = vadd.f32 %v705, %v708
  %v712 = vmax.f32 %v709, 0.0
  %v713 = vmax.f32 %v710, 0.0
  %v714 = vmax.f32 %v711, 0.0
  %v715 = vld [vmem:[%s2 + $0x160] sm:$0xff]
  %v716 = vld [vmem:[%s2 + $0x170] sm:$0xff]
  %v717 = vld [vmem:[%s2 + $0x180] sm:$0xff]
  %v718 = vld [vmem:[%s2 + $0x190] sm:$0xff]
  %v719 = vld [vmem:[%s2 + $0x1a0] sm:$0xff]
  %v720 = vld [vmem:[%s2 + $0x1b0] sm:$0xff]
  %v721 = vld [vmem:[%s2 + $0x1c0] sm:$0xff]
  %v722 = vld [vmem:[%s2 + $0x1d0] sm:$0xff]
  %v723 = vld [vmem:[%s2 + $0x1e0] sm:$0xff]
  %v724 = vld [vmem:[%s2 + $0x1f0] sm:$0xff]
  %v725 = vld [vmem:[%s2 + $0x200] sm:$0xff]
  %v726 = vld [vmem:[%s2 + $0x210] sm:$0xff]
  %v727 = vld [vmem:[%s1 + $0x6] ss:$0 sm:$0xff]
  %vm728 = vcmask 785408
  %v730 = vsel %vm728, %v712, 0
  %v733 = vsel %vm728, %v713, 0
  %v736 = vsel %vm728, %v714, 0
  %738 = vmatprep.subr.mxu0 0.0
  %739 = vmatpush1.msra.mxu0 %v715
  %740 = vmatprep.subr.mxu0 0.0
  %741 = vmatpush1.msra.mxu0 %v716
  %742 = vmatprep.subr.mxu0 0.0
  %743 = vmatpush1.msra.mxu0 %v717
  %744 = vmatprep.subr.mxu0 0.0
  %745 = vmatpush1.msra.mxu0 %v718
  %746 = vmatprep.subr.mxu0 0.0
  %747 = vmatpush1.msra.mxu0 %v719
  %748 = vmatprep.subr.mxu0 0.0
  %749 = vmatpush1.msra.mxu0 %v720
  %750 = vmatprep.subr.mxu0 0.0
  %751 = vmatpush1.msra.mxu0 %v721
  %752 = vmatprep.subr.mxu0 0.0
  %753 = vmatpush1.msra.mxu0 %v722
  %754 = vmatprep.subr.mxu0 0.0
  %755 = vmatpush1.msra.mxu0 %v723
  %756 = vmatprep.subr.mxu0 0.0
  %757 = vmatpush1.msra.mxu0 %v724
  %758 = vmatprep.subr.mxu0 0.0
  %759 = vmatpush1.msra.mxu0 %v725
  %760 = vmatprep.subr.mxu0 0.0
  %761 = vmatpush1.msra.mxu0 %v726
  %762 = vmatprep.subr.mxu0 0.0
  %763 = vmatpush1.msra.mxu0 0.0
  %764 = vmatprep.subr.mxu0 0.0
  %765 = vmatpush1.msra.mxu0 0.0
  %766 = vmatprep.subr.mxu0 0.0
  %767 = vmatpush1.msra.mxu0 0.0
  %768 = vmatprep.subr.mxu0 0.0
  %769 = vmatpush1.msra.mxu0 0.0
  %770 = vmatprep.subr.mxu0 0.0
  %771 = vmatpush1.msra.mxu0 0.0
  %772 = vmatprep.subr.mxu0 0.0
  %773 = vmatpush1.msra.mxu0 0.0
  %774 = vmatprep.subr.mxu0 0.0
  %775 = vmatpush1.msra.mxu0 0.0
  %776 = vmatprep.subr.mxu0 0.0
  %777 = vmatpush1.msra.mxu0 0.0
  %778 = vmatprep.subr.mxu0 0.0
  %779 = vmatpush1.msra.mxu0 0.0
  %780 = vmatprep.subr.mxu0 0.0
  %781 = vmatpush1.msra.mxu0 0.0
  %782 = vmatprep.subr.mxu0 0.0
  %783 = vmatpush1.msra.mxu0 0.0
  %784 = vmatprep.subr.mxu0 0.0
  %785 = vmatpush1.msra.mxu0 0.0
  %786 = vmatprep.subr.mxu0 0.0
  %787 = vmatpush1.msra.mxu0 0.0
  %788 = vmatprep.subr.mxu0 0.0
  %789 = vmatpush1.msra.mxu0 0.0
  %790 = vmatprep.subr.mxu0 0.0
  %791 = vmatpush1.msra.mxu0 0.0
  %792 = vmatprep.subr.mxu0 0.0
  %793 = vmatpush1.msra.mxu0 0.0
  %794 = vmatprep.subr.mxu0 0.0
  %795 = vmatpush1.msra.mxu0 0.0
  %796 = vmatprep.subr.mxu0 0.0
  %797 = vmatpush1.msra.mxu0 0.0
  %798 = vmatprep.subr.mxu0 0.0
  %799 = vmatpush1.msra.mxu0 0.0
  %800 = vmatprep.subr.mxu0 0.0
  %801 = vmatpush1.msra.mxu0 0.0
  %802 = vmatprep.mubr.f32.mxu0 0.0
  %803 = vmatmul.mubr.f32.gmra.mrb[0].mxu0 %v730
  %v804 = vpop.f32.mrb[0].mxu0
  %v805 = vadd.f32 %v727, %v804
  %v806 = vpop.f32.mrb[0].mxu0
  %807 = vmatprep.mubr.f32.mxu0 0.0
  %808 = vmatmul.mubr.f32.gmra.mrb[0].mxu0 %v733
  %v809 = vpop.f32.mrb[0].mxu0
  %v810 = vadd.f32 %v727, %v809
  %v811 = vpop.f32.mrb[0].mxu0
  %812 = vmatprep.mubr.f32.mxu0 0.0
  %813 = vmatmul.mubr.f32.gmra.mrb[0].mxu0 %v736
  %v814 = vpop.f32.mrb[0].mxu0
  %v815 = vadd.f32 %v727, %v814
  %v816 = vpop.f32.mrb[0].mxu0
  %817 = vdwg.mxu0
  %v818 = vmax.f32 %v805, 0.0
  %v819 = vmax.f32 %v810, 0.0
  %v820 = vmax.f32 %v815, 0.0
  %v821 = vld [vmem:[%s2 + $0x220] sm:$0xff]
  %v822 = vld [vmem:[%s2 + $0x230] sm:$0xff]
  %v823 = vld [vmem:[%s2 + $0x240] sm:$0xff]
  %v824 = vld [vmem:[%s2 + $0x250] sm:$0xff]
  %v825 = vld [vmem:[%s2 + $0x260] sm:$0xff]
  %v826 = vld [vmem:[%s2 + $0x270] sm:$0xff]
  %v827 = vld [vmem:[%s2 + $0x280] sm:$0xff]
  %v828 = vld [vmem:[%s2 + $0x290] sm:$0xff]
  %v829 = vld [vmem:[%s2 + $0x2a0] sm:$0xff]
  %v830 = vld [vmem:[%s2 + $0x2b0] sm:$0xff]
  %v831 = vld [vmem:[%s2 + $0x2c0] sm:$0xff]
  %v832 = vld [vmem:[%s2 + $0x2d0] sm:$0xff]
  %v833 = vld [vmem:[%s1 + $0x7] ss:$0 sm:$0xff]
  %v835 = vsel %vm728, %v818, 0
  %v838 = vsel %vm728, %v819, 0
  %v841 = vsel %vm728, %v820, 0
  %843 = vmatprep.subr.mxu0 0.0
  %844 = vmatpush1.msra.mxu0 %v821
  %845 = vmatprep.subr.mxu0 0.0
  %846 = vmatpush1.msra.mxu0 %v822
  %847 = vmatprep.subr.mxu0 0.0
  %848 = vmatpush1.msra.mxu0 %v823
  %849 = vmatprep.subr.mxu0 0.0
  %850 = vmatpush1.msra.mxu0 %v824
  %851 = vmatprep.subr.mxu0 0.0
  %852 = vmatpush1.msra.mxu0 %v825
  %853 = vmatprep.subr.mxu0 0.0
  %854 = vmatpush1.msra.mxu0 %v826
  %855 = vmatprep.subr.mxu0 0.0
  %856 = vmatpush1.msra.mxu0 %v827
  %857 = vmatprep.subr.mxu0 0.0
  %858 = vmatpush1.msra.mxu0 %v828
  %859 = vmatprep.subr.mxu0 0.0
  %860 = vmatpush1.msra.mxu0 %v829
  %861 = vmatprep.subr.mxu0 0.0
  %862 = vmatpush1.msra.mxu0 %v830
  %863 = vmatprep.subr.mxu0 0.0
  %864 = vmatpush1.msra.mxu0 %v831
  %865 = vmatprep.subr.mxu0 0.0
  %866 = vmatpush1.msra.mxu0 %v832
  %867 = vmatprep.subr.mxu0 0.0
  %868 = vmatpush1.msra.mxu0 0.0
  %869 = vmatprep.subr.mxu0 0.0
  %870 = vmatpush1.msra.mxu0 0.0
  %871 = vmatprep.subr.mxu0 0.0
  %872 = vmatpush1.msra.mxu0 0.0
  %873 = vmatprep.subr.mxu0 0.0
  %874 = vmatpush1.msra.mxu0 0.0
  %875 = vmatprep.subr.mxu0 0.0
  %876 = vmatpush1.msra.mxu0 0.0
  %877 = vmatprep.subr.mxu0 0.0
  %878 = vmatpush1.msra.mxu0 0.0
  %879 = vmatprep.subr.mxu0 0.0
  %880 = vmatpush1.msra.mxu0 0.0
  %881 = vmatprep.subr.mxu0 0.0
  %882 = vmatpush1.msra.mxu0 0.0
  %883 = vmatprep.subr.mxu0 0.0
  %884 = vmatpush1.msra.mxu0 0.0
  %885 = vmatprep.subr.mxu0 0.0
  %886 = vmatpush1.msra.mxu0 0.0
  %887 = vmatprep.subr.mxu0 0.0
  %888 = vmatpush1.msra.mxu0 0.0
  %889 = vmatprep.subr.mxu0 0.0
  %890 = vmatpush1.msra.mxu0 0.0
  %891 = vmatprep.subr.mxu0 0.0
  %892 = vmatpush1.msra.mxu0 0.0
  %893 = vmatprep.subr.mxu0 0.0
  %894 = vmatpush1.msra.mxu0 0.0
  %895 = vmatprep.subr.mxu0 0.0
  %896 = vmatpush1.msra.mxu0 0.0
  %897 = vmatprep.subr.mxu0 0.0
  %898 = vmatpush1.msra.mxu0 0.0
  %899 = vmatprep.subr.mxu0 0.0
  %900 = vmatpush1.msra.mxu0 0.0
  %901 = vmatprep.subr.mxu0 0.0
  %902 = vmatpush1.msra.mxu0 0.0
  %903 = vmatprep.subr.mxu0 0.0
  %904 = vmatpush1.msra.mxu0 0.0
  %905 = vmatprep.subr.mxu0 0.0
  %906 = vmatpush1.msra.mxu0 0.0
  %907 = vmatprep.mubr.f32.mxu0 0.0
  %908 = vmatmul.mubr.f32.gmra.mrb[0].mxu0 %v835
  %v909 = vpop.f32.mrb[0].mxu0
  %v910 = vadd.f32 %v833, %v909
  %v911 = vpop.f32.mrb[0].mxu0
  %912 = vmatprep.mubr.f32.mxu0 0.0
  %913 = vmatmul.mubr.f32.gmra.mrb[0].mxu0 %v838
  %v914 = vpop.f32.mrb[0].mxu0
  %v915 = vadd.f32 %v833, %v914
  %v916 = vpop.f32.mrb[0].mxu0
  %917 = vmatprep.mubr.f32.mxu0 0.0
  %918 = vmatmul.mubr.f32.gmra.mrb[0].mxu0 %v841
  %v919 = vpop.f32.mrb[0].mxu0
  %v920 = vadd.f32 %v833, %v919
  %v921 = vpop.f32.mrb[0].mxu0
  %922 = vdwg.mxu0
  %v923 = vsub.f32 %v910, %v30
  %v924 = vmul.f32 %v923, %v923
  %v925 = vsel %vm117, %v924, 0.0
  %926 = vadd.xlane.f32.xlu0 %v925
  %v927 = vpop.xlane.xlu0 %926
  %v928 = vrcp.pop 16.0
  %v929 = vmul.f32 %v927, %v928
  %v930 = vld [vmem:[%s0 + $0x8] sm:$0xff]
  %v931 = vsub.f32 %v930, %v22
  %v932 = vmul.f32 %v931, %v27
  %v933 = vmax.f32 %v932, -10.0
  %v934 = vmin.f32 %v933, 10.0
  %936 = vrot.lane.b32.xlu0 %v934, 16
  %v937 = vpop.permute.xlu0 %936
  %v939 = vsub.f32 %v915, %v937
  %v940 = vmul.f32 %v939, %v939
  %942 = vrot.lane.b32.xlu0 %v940, 112
  %v943 = vpop.permute.xlu0 %942
  %v945 = vsel %vm117, %v943, 0.0
  %946 = vadd.xlane.f32.xlu0 %v945
  %v947 = vpop.xlane.xlu0 %946
  %v948 = vmul.f32 %v947, %v928
  %949 = vrot.lane.b32.xlu0 %v31, 32
  %v950 = vpop.permute.xlu0 %949
  %v952 = vsub.f32 %v920, %v950
  %v953 = vmul.f32 %v952, %v952
  %955 = vrot.lane.b32.xlu0 %v953, 96
  %v956 = vpop.permute.xlu0 %955
  %v958 = vsel %vm35, %v956, 0.0
  %959 = vadd.xlane.f32.xlu0 %v958
  %v960 = vpop.xlane.xlu0 %959
  %v961 = vrcp.pop 4.0
  %v962 = vmul.f32 %v960, %v961
  %v963 = vadd.f32 %v929, %v948
  %v964 = vadd.f32 %v963, %v962
  %v965 = vld [vmem:[%s2 + $0x2e0] sm:$0xff]
  %v966 = vld [vmem:[%s2 + $0x2e8] sm:$0xff]
  %v967 = vld [vmem:[%s2 + $0x2f0] sm:$0xff]
  %v968 = vld [vmem:[%s2 + $0x2f8] sm:$0xff]
  %v969 = vld [vmem:[%s2 + $0x300] sm:$0xff]
  %v970 = vld [vmem:[%s2 + $0x308] sm:$0xff]
  %v971 = vld [vmem:[%s2 + $0x310] sm:$0xff]
  %v972 = vld [vmem:[%s2 + $0x318] sm:$0xff]
  %v973 = vld [vmem:[%s2 + $0x320] sm:$0xff]
  %v974 = vld [vmem:[%s2 + $0x328] sm:$0xff]
  %v975 = vld [vmem:[%s2 + $0x330] sm:$0xff]
  %v976 = vld [vmem:[%s2 + $0x338] sm:$0xff]
  %977 = vmatprep.subr.mxu0 %v974
  %978 = vmatpush1.msra.mxu0 %v973
  %979 = vmatprep.subr.mxu0 %v976
  %980 = vmatpush1.msra.mxu0 %v975
  %981 = vmatprep.subr.mxu0 0.0
  %982 = vmatpush1.msra.mxu0 0.0
  %983 = vmatprep.subr.mxu0 0.0
  %984 = vmatpush1.msra.mxu0 0.0
  %985 = vmatprep.subr.mxu0 0.0
  %986 = vmatpush1.msra.mxu0 0.0
  %987 = vmatprep.subr.mxu0 0.0
  %988 = vmatpush1.msra.mxu0 0.0
  %989 = vmatprep.subr.mxu0 0.0
  %990 = vmatpush1.msra.mxu0 0.0
  %991 = vmatprep.subr.mxu0 0.0
  %992 = vmatpush1.msra.mxu0 0.0
  %993 = vmatprep.subr.mxu0 0.0
  %994 = vmatpush1.msra.mxu0 0.0
  %995 = vmatprep.subr.mxu0 0.0
  %996 = vmatpush1.msra.mxu0 0.0
  %997 = vmatprep.subr.mxu0 0.0
  %998 = vmatpush1.msra.mxu0 0.0
  %999 = vmatprep.subr.mxu0 0.0
  %1000 = vmatpush1.msra.mxu0 0.0
  %1001 = vmatprep.subr.mxu0 0.0
  %1002 = vmatpush1.msra.mxu0 0.0
  %1003 = vmatprep.subr.mxu0 0.0
  %1004 = vmatpush1.msra.mxu0 0.0
  %1005 = vmatprep.subr.mxu0 0.0
  %1006 = vmatpush1.msra.mxu0 0.0
  %1007 = vmatprep.subr.mxu0 0.0
  %1008 = vmatpush1.msra.mxu0 0.0
  %1009 = vmatprep.subr.mxu0 0.0
  %1010 = vmatpush1.msra.mxu0 0.0
  %1011 = vmatprep.subr.mxu0 0.0
  %1012 = vmatpush1.msra.mxu0 0.0
  %1013 = vmatprep.subr.mxu0 0.0
  %1014 = vmatpush1.msra.mxu0 0.0
  %1015 = vmatprep.subr.mxu0 0.0
  %1016 = vmatpush1.msra.mxu0 0.0
  %1017 = vmatprep.subr.mxu0 0.0
  %1018 = vmatpush1.msra.mxu0 0.0
  %1019 = vmatprep.subr.mxu0 0.0
  %1020 = vmatpush1.msra.mxu0 0.0
  %1021 = vmatprep.subr.mxu0 0.0
  %1022 = vmatpush1.msra.mxu0 0.0
  %1023 = vmatprep.subr.mxu0 0.0
  %1024 = vmatpush1.msra.mxu0 0.0
  %1025 = vmatprep.subr.mxu0 0.0
  %1026 = vmatpush1.msra.mxu0 0.0
  %1027 = vmatprep.subr.mxu0 0.0
  %1028 = vmatpush1.msra.mxu0 0.0
  %1029 = vmatprep.subr.mxu0 0.0
  %1030 = vmatpush1.msra.mxu0 0.0
  %1031 = vmatprep.subr.mxu0 0.0
  %1032 = vmatpush1.msra.mxu0 0.0
  %1033 = vmatprep.subr.mxu0 0.0
  %1034 = vmatpush1.msra.mxu0 0.0
  %1035 = vmatprep.subr.mxu0 0.0
  %1036 = vmatpush1.msra.mxu0 0.0
  %1037 = vmatprep.subr.mxu0 0.0
  %1038 = vmatpush1.msra.mxu0 0.0
  %1039 = vmatprep.subr.mxu0 0.0
  %1040 = vmatpush1.msra.mxu0 0.0
  %1041 = vmatprep.mubr.f32.mxu0 0.0
  %1042 = vmatmul.mubr.f32.gmra.mrb[0].mxu0 %v119
  %v1043 = vpop.f32.mrb[0].mxu0
  %v1044 = vadd.f32 0.0, %v1043
  %v1045 = vpop.f32.mrb[0].mxu0
  %v1046 = vadd.f32 0.0, %v1045
  %1047 = vdwg.mxu0
  %1048 = vmatprep.subr.mxu0 %v966
  %1049 = vmatpush1.msra.mxu0 %v965
  %1050 = vmatprep.subr.mxu0 %v968
  %1051 = vmatpush1.msra.mxu0 %v967
  %1052 = vmatprep.subr.mxu0 %v970
  %1053 = vmatpush1.msra.mxu0 %v969
  %1054 = vmatprep.subr.mxu0 %v972
  %1055 = vmatpush1.msra.mxu0 %v971
  %1056 = vmatprep.subr.mxu0 0.0
  %1057 = vmatpush1.msra.mxu0 0.0
  %1058 = vmatprep.subr.mxu0 0.0
  %1059 = vmatpush1.msra.mxu0 0.0
  %1060 = vmatprep.subr.mxu0 0.0
  %1061 = vmatpush1.msra.mxu0 0.0
  %1062 = vmatprep.subr.mxu0 0.0
  %1063 = vmatpush1.msra.mxu0 0.0
  %1064 = vmatprep.subr.mxu0 0.0
  %1065 = vmatpush1.msra.mxu0 0.0
  %1066 = vmatprep.subr.mxu0 0.0
  %1067 = vmatpush1.msra.mxu0 0.0
  %1068 = vmatprep.subr.mxu0 0.0
  %1069 = vmatpush1.msra.mxu0 0.0
  %1070 = vmatprep.subr.mxu0 0.0
  %1071 = vmatpush1.msra.mxu0 0.0
  %1072 = vmatprep.subr.mxu0 0.0
  %1073 = vmatpush1.msra.mxu0 0.0
  %1074 = vmatprep.subr.mxu0 0.0
  %1075 = vmatpush1.msra.mxu0 0.0
  %1076 = vmatprep.subr.mxu0 0.0
  %1077 = vmatpush1.msra.mxu0 0.0
  %1078 = vmatprep.subr.mxu0 0.0
  %1079 = vmatpush1.msra.mxu0 0.0
  %1080 = vmatprep.subr.mxu0 0.0
  %1081 = vmatpush1.msra.mxu0 0.0
  %1082 = vmatprep.subr.mxu0 0.0
  %1083 = vmatpush1.msra.mxu0 0.0
  %1084 = vmatprep.subr.mxu0 0.0
  %1085 = vmatpush1.msra.mxu0 0.0
  %1086 = vmatprep.subr.mxu0 0.0
  %1087 = vmatpush1.msra.mxu0 0.0
  %1088 = vmatprep.subr.mxu0 0.0
  %1089 = vmatpush1.msra.mxu0 0.0
  %1090 = vmatprep.subr.mxu0 0.0
  %1091 = vmatpush1.msra.mxu0 0.0
  %1092 = vmatprep.subr.mxu0 0.0
  %1093 = vmatpush1.msra.mxu0 0.0
  %1094 = vmatprep.subr.mxu0 0.0
  %1095 = vmatpush1.msra.mxu0 0.0
  %1096 = vmatprep.subr.mxu0 0.0
  %1097 = vmatpush1.msra.mxu0 0.0
  %1098 = vmatprep.subr.mxu0 0.0
  %1099 = vmatpush1.msra.mxu0 0.0
  %1100 = vmatprep.subr.mxu0 0.0
  %1101 = vmatpush1.msra.mxu0 0.0
  %1102 = vmatprep.subr.mxu0 0.0
  %1103 = vmatpush1.msra.mxu0 0.0
  %1104 = vmatprep.subr.mxu0 0.0
  %1105 = vmatpush1.msra.mxu0 0.0
  %1106 = vmatprep.subr.mxu0 0.0
  %1107 = vmatpush1.msra.mxu0 0.0
  %1108 = vmatprep.subr.mxu0 0.0
  %1109 = vmatpush1.msra.mxu0 0.0
  %1110 = vmatprep.subr.mxu0 0.0
  %1111 = vmatpush1.msra.mxu0 0.0
  %1112 = vmatprep.mubr.f32.mxu0 0.0
  %1113 = vmatmul.mubr.f32.gmra.mrb[0].mxu0 %v626
  %v1114 = vpop.f32.mrb[0].mxu0
  %v1115 = vadd.f32 %v1044, %v1114
  %v1116 = vpop.f32.mrb[0].mxu0
  %v1117 = vadd.f32 %v1046, %v1116
  %1118 = vdwg.mxu0
  %s1119 = scalar_lea.vmem %s1, 16
  %v1120 = vld [vmem:[%s1119] ss:$8 sm:$0x3]
  %v1122 = vlaneseq
  %v1123 = vshrl.u32 %v1122, 7
  %v1124 = vsub.s32 0, %v1123
  %v1125 = vrot.slane %v1120, %v1124
  %v1126 = vlaneseq
  %v1127 = vshrl.u32 %v1126, 7
  %v1128 = vsub.s32 1, %v1127
  %v1129 = vrot.slane %v1120, %v1128
  %v1132 = vadd.f32 %v1115, %v1125
  %v1133 = vadd.f32 %v1117, %v1129
  %v1134 = vmax.f32 %v1132, 0.0
  %v1135 = vld [vmem:[%s2 + $0x340] sm:$0xff]
  %v1136 = vld [vmem:[%s2 + $0x350] sm:$0xff]
  %v1137 = vld [vmem:[%s2 + $0x360] sm:$0xff]
  %v1138 = vld [vmem:[%s2 + $0x370] sm:$0xff]
  %v1139 = vld [vmem:[%s2 + $0x380] sm:$0xff]
  %v1140 = vld [vmem:[%s2 + $0x390] sm:$0xff]
  %v1141 = vld [vmem:[%s2 + $0x3a0] sm:$0xff]
  %v1142 = vld [vmem:[%s2 + $0x3b0] sm:$0xff]
  %v1143 = vld [vmem:[%s2 + $0x3c0] sm:$0xff]
  %v1144 = vld [vmem:[%s2 + $0x3d0] sm:$0xff]
  %v1145 = vld [vmem:[%s2 + $0x3e0] sm:$0xff]
  %v1146 = vld [vmem:[%s2 + $0x3f0] sm:$0xff]
  %v1147 = vld [vmem:[%s2 + $0x400] sm:$0xff]
  %v1148 = vld [vmem:[%s2 + $0x410] sm:$0xff]
  %v1149 = vld [vmem:[%s2 + $0x420] sm:$0xff]
  %v1150 = vld [vmem:[%s2 + $0x430] sm:$0xff]
  %v1151 = vld [vmem:[%s1 + $0x11] ss:$0 sm:$0xff]
  %1152 = vmatprep.subr.mxu0 0.0
  %1153 = vmatpush1.msra.mxu0 %v1135
  %1154 = vmatprep.subr.mxu0 0.0
  %1155 = vmatpush1.msra.mxu0 %v1136
  %1156 = vmatprep.subr.mxu0 0.0
  %1157 = vmatpush1.msra.mxu0 %v1137
  %1158 = vmatprep.subr.mxu0 0.0
  %1159 = vmatpush1.msra.mxu0 %v1138
  %1160 = vmatprep.subr.mxu0 0.0
  %1161 = vmatpush1.msra.mxu0 %v1139
  %1162 = vmatprep.subr.mxu0 0.0
  %1163 = vmatpush1.msra.mxu0 %v1140
  %1164 = vmatprep.subr.mxu0 0.0
  %1165 = vmatpush1.msra.mxu0 %v1141
  %1166 = vmatprep.subr.mxu0 0.0
  %1167 = vmatpush1.msra.mxu0 %v1142
  %1168 = vmatprep.subr.mxu0 0.0
  %1169 = vmatpush1.msra.mxu0 %v1143
  %1170 = vmatprep.subr.mxu0 0.0
  %1171 = vmatpush1.msra.mxu0 %v1144
  %1172 = vmatprep.subr.mxu0 0.0
  %1173 = vmatpush1.msra.mxu0 %v1145
  %1174 = vmatprep.subr.mxu0 0.0
  %1175 = vmatpush1.msra.mxu0 %v1146
  %1176 = vmatprep.subr.mxu0 0.0
  %1177 = vmatpush1.msra.mxu0 %v1147
  %1178 = vmatprep.subr.mxu0 0.0
  %1179 = vmatpush1.msra.mxu0 %v1148
  %1180 = vmatprep.subr.mxu0 0.0
  %1181 = vmatpush1.msra.mxu0 %v1149
  %1182 = vmatprep.subr.mxu0 0.0
  %1183 = vmatpush1.msra.mxu0 %v1150
  %1184 = vmatprep.subr.mxu0 0.0
  %1185 = vmatpush1.msra.mxu0 0.0
  %1186 = vmatprep.subr.mxu0 0.0
  %1187 = vmatpush1.msra.mxu0 0.0
  %1188 = vmatprep.subr.mxu0 0.0
  %1189 = vmatpush1.msra.mxu0 0.0
  %1190 = vmatprep.subr.mxu0 0.0
  %1191 = vmatpush1.msra.mxu0 0.0
  %1192 = vmatprep.subr.mxu0 0.0
  %1193 = vmatpush1.msra.mxu0 0.0
  %1194 = vmatprep.subr.mxu0 0.0
  %1195 = vmatpush1.msra.mxu0 0.0
  %1196 = vmatprep.subr.mxu0 0.0
  %1197 = vmatpush1.msra.mxu0 0.0
  %1198 = vmatprep.subr.mxu0 0.0
  %1199 = vmatpush1.msra.mxu0 0.0
  %1200 = vmatprep.subr.mxu0 0.0
  %1201 = vmatpush1.msra.mxu0 0.0
  %1202 = vmatprep.subr.mxu0 0.0
  %1203 = vmatpush1.msra.mxu0 0.0
  %1204 = vmatprep.subr.mxu0 0.0
  %1205 = vmatpush1.msra.mxu0 0.0
  %1206 = vmatprep.subr.mxu0 0.0
  %1207 = vmatpush1.msra.mxu0 0.0
  %1208 = vmatprep.subr.mxu0 0.0
  %1209 = vmatpush1.msra.mxu0 0.0
  %1210 = vmatprep.subr.mxu0 0.0
  %1211 = vmatpush1.msra.mxu0 0.0
  %1212 = vmatprep.subr.mxu0 0.0
  %1213 = vmatpush1.msra.mxu0 0.0
  %1214 = vmatprep.subr.mxu0 0.0
  %1215 = vmatpush1.msra.mxu0 0.0
  %1216 = vmatprep.mubr.f32.mxu0 0.0
  %1217 = vmatmul.mubr.f32.gmra.mrb[0].mxu0 %v1134
  %v1218 = vpop.f32.mrb[0].mxu0
  %v1219 = vadd.f32 %v1151, %v1218
  %v1220 = vpop.f32.mrb[0].mxu0
  %1221 = vdwg.mxu0
  %v1222 = vmax.f32 %v1219, 0.0
  %v1223 = vld [vmem:[%s2 + $0x440] sm:$0xff]
  %v1224 = vld [vmem:[%s2 + $0x450] sm:$0xff]
  %v1225 = vld [vmem:[%s2 + $0x460] sm:$0xff]
  %v1226 = vld [vmem:[%s2 + $0x470] sm:$0xff]
  %v1227 = vld [vmem:[%s2 + $0x480] sm:$0xff]
  %v1228 = vld [vmem:[%s2 + $0x490] sm:$0xff]
  %v1229 = vld [vmem:[%s2 + $0x4a0] sm:$0xff]
  %v1230 = vld [vmem:[%s2 + $0x4b0] sm:$0xff]
  %v1231 = vld [vmem:[%s2 + $0x4c0] sm:$0xff]
  %v1232 = vld [vmem:[%s2 + $0x4d0] sm:$0xff]
  %v1233 = vld [vmem:[%s2 + $0x4e0] sm:$0xff]
  %v1234 = vld [vmem:[%s2 + $0x4f0] sm:$0xff]
  %v1235 = vld [vmem:[%s2 + $0x500] sm:$0xff]
  %v1236 = vld [vmem:[%s2 + $0x510] sm:$0xff]
  %v1237 = vld [vmem:[%s2 + $0x520] sm:$0xff]
  %v1238 = vld [vmem:[%s2 + $0x530] sm:$0xff]
  %v1239 = vld [vmem:[%s1 + $0x12] ss:$0 sm:$0xff]
  %1240 = vmatprep.subr.mxu0 0.0
  %1241 = vmatpush1.msra.mxu0 %v1223
  %1242 = vmatprep.subr.mxu0 0.0
  %1243 = vmatpush1.msra.mxu0 %v1224
  %1244 = vmatprep.subr.mxu0 0.0
  %1245 = vmatpush1.msra.mxu0 %v1225
  %1246 = vmatprep.subr.mxu0 0.0
  %1247 = vmatpush1.msra.mxu0 %v1226
  %1248 = vmatprep.subr.mxu0 0.0
  %1249 = vmatpush1.msra.mxu0 %v1227
  %1250 = vmatprep.subr.mxu0 0.0
  %1251 = vmatpush1.msra.mxu0 %v1228
  %1252 = vmatprep.subr.mxu0 0.0
  %1253 = vmatpush1.msra.mxu0 %v1229
  %1254 = vmatprep.subr.mxu0 0.0
  %1255 = vmatpush1.msra.mxu0 %v1230
  %1256 = vmatprep.subr.mxu0 0.0
  %1257 = vmatpush1.msra.mxu0 %v1231
  %1258 = vmatprep.subr.mxu0 0.0
  %1259 = vmatpush1.msra.mxu0 %v1232
  %1260 = vmatprep.subr.mxu0 0.0
  %1261 = vmatpush1.msra.mxu0 %v1233
  %1262 = vmatprep.subr.mxu0 0.0
  %1263 = vmatpush1.msra.mxu0 %v1234
  %1264 = vmatprep.subr.mxu0 0.0
  %1265 = vmatpush1.msra.mxu0 %v1235
  %1266 = vmatprep.subr.mxu0 0.0
  %1267 = vmatpush1.msra.mxu0 %v1236
  %1268 = vmatprep.subr.mxu0 0.0
  %1269 = vmatpush1.msra.mxu0 %v1237
  %1270 = vmatprep.subr.mxu0 0.0
  %1271 = vmatpush1.msra.mxu0 %v1238
  %1272 = vmatprep.subr.mxu0 0.0
  %1273 = vmatpush1.msra.mxu0 0.0
  %1274 = vmatprep.subr.mxu0 0.0
  %1275 = vmatpush1.msra.mxu0 0.0
  %1276 = vmatprep.subr.mxu0 0.0
  %1277 = vmatpush1.msra.mxu0 0.0
  %1278 = vmatprep.subr.mxu0 0.0
  %1279 = vmatpush1.msra.mxu0 0.0
  %1280 = vmatprep.subr.mxu0 0.0
  %1281 = vmatpush1.msra.mxu0 0.0
  %1282 = vmatprep.subr.mxu0 0.0
  %1283 = vmatpush1.msra.mxu0 0.0
  %1284 = vmatprep.subr.mxu0 0.0
  %1285 = vmatpush1.msra.mxu0 0.0
  %1286 = vmatprep.subr.mxu0 0.0
  %1287 = vmatpush1.msra.mxu0 0.0
  %1288 = vmatprep.subr.mxu0 0.0
  %1289 = vmatpush1.msra.mxu0 0.0
  %1290 = vmatprep.subr.mxu0 0.0
  %1291 = vmatpush1.msra.mxu0 0.0
  %1292 = vmatprep.subr.mxu0 0.0
  %1293 = vmatpush1.msra.mxu0 0.0
  %1294 = vmatprep.subr.mxu0 0.0
  %1295 = vmatpush1.msra.mxu0 0.0
  %1296 = vmatprep.subr.mxu0 0.0
  %1297 = vmatpush1.msra.mxu0 0.0
  %1298 = vmatprep.subr.mxu0 0.0
  %1299 = vmatpush1.msra.mxu0 0.0
  %1300 = vmatprep.subr.mxu0 0.0
  %1301 = vmatpush1.msra.mxu0 0.0
  %1302 = vmatprep.subr.mxu0 0.0
  %1303 = vmatpush1.msra.mxu0 0.0
  %1304 = vmatprep.mubr.f32.mxu0 0.0
  %1305 = vmatmul.mubr.f32.gmra.mrb[0].mxu0 %v1222
  %v1306 = vpop.f32.mrb[0].mxu0
  %v1307 = vadd.f32 %v1239, %v1306
  %v1308 = vpop.f32.mrb[0].mxu0
  %1309 = vdwg.mxu0
  %v1310 = vld [vmem:[%s1 + $0x13] ss:$0 sm:$0xff]
  %v1311 = vmul.f32 %v1310, 1.442695
  %v1312 = vpow.pop %v1311
  %v1313 = vld [vmem:[%s0 + $0x28] sm:$0xff]
  %v1314 = vmul.f32 %v1312, %v1313
  %1316 = vrot.lane.b32.xlu0 %v1314, 1
  %v1317 = vpop.permute.xlu0 %1316
  %v1319 = vadd.f32 %v1307, %v1317
  %v1320 = vlaneseq
  %v1321 = vshrl.u32 %v1320, 7
  %vm1322 = vcmp.lt.s32.totalorder %v1321, 4
  %v1323 = vld [vmem:[%s0 + $0x20] sm:$0xff]
  %1325 = vrot.lane.b32.xlu0 %v1323, 1
  %v1326 = vpop.permute.xlu0 %1325
  %v1328 = vsel %vm1322, %v1319, %v1326
  %v1329 = vsub.f32 %v1319, %v1307
  %v1330 = vmul.f32 %v1310, -2.0
  %v1331 = vmul.f32 %v1330, 1.442695
  %v1332 = vpow.pop %v1331
  %v1333 = vmul.f32 %v1332, 0.5
  %v1334 = vmul.f32 %v1329, %v1329
  %v1335 = vsub.f32 0.0, %v1334
  %1337 = vrot.lane.b32.xlu0 %v1333, 1
  %v1338 = vpop.permute.xlu0 %1337
  %v1340 = vmul.f32 %v1335, %v1338
  %1342 = vrot.lane.b32.xlu0 %v1310, 1
  %v1343 = vpop.permute.xlu0 %1342
  %v1345 = vsub.f32 %v1340, %v1343
  %v1346 = vsub.f32 %v1345, 0.9189385
  %1348 = vrot.lane.b32.xlu0 %v1346, 127
  %v1349 = vpop.permute.xlu0 %1348
  %v1351 = vsel %vm35, %v1349, 0.0
  %1352 = vadd.xlane.f32.xlu0 %v1351
  %v1353 = vpop.xlane.xlu0 %1352
  %v1354 = vld [vmem:[%s2 + $0x540] sm:$0xf]
  %v1355 = vld [vmem:[%s1 + $0x14] ss:$0 sm:$0xff]
  %1357 = vrot.lane.b32.xlu0 %v1328, 127
  %v1358 = vpop.permute.xlu0 %1357
  %v1359 = vsel %vm35, %v1358, 0
  %v1362 = vsel %vm39, %v1354, 0
  %1364 = vmatprep.subr.mxu0 0.0
  %1365 = vmatpush1.msra.mxu0 %v1362
  %1366 = vmatprep.subr.mxu0 0.0
  %1367 = vmatpush1.msra.mxu0 0.0
  %1368 = vmatprep.subr.mxu0 0.0
  %1369 = vmatpush1.msra.mxu0 0.0
  %1370 = vmatprep.subr.mxu0 0.0
  %1371 = vmatpush1.msra.mxu0 0.0
  %1372 = vmatprep.subr.mxu0 0.0
  %1373 = vmatpush1.msra.mxu0 0.0
  %1374 = vmatprep.subr.mxu0 0.0
  %1375 = vmatpush1.msra.mxu0 0.0
  %1376 = vmatprep.subr.mxu0 0.0
  %1377 = vmatpush1.msra.mxu0 0.0
  %1378 = vmatprep.subr.mxu0 0.0
  %1379 = vmatpush1.msra.mxu0 0.0
  %1380 = vmatprep.subr.mxu0 0.0
  %1381 = vmatpush1.msra.mxu0 0.0
  %1382 = vmatprep.subr.mxu0 0.0
  %1383 = vmatpush1.msra.mxu0 0.0
  %1384 = vmatprep.subr.mxu0 0.0
  %1385 = vmatpush1.msra.mxu0 0.0
  %1386 = vmatprep.subr.mxu0 0.0
  %1387 = vmatpush1.msra.mxu0 0.0
  %1388 = vmatprep.subr.mxu0 0.0
  %1389 = vmatpush1.msra.mxu0 0.0
  %1390 = vmatprep.subr.mxu0 0.0
  %1391 = vmatpush1.msra.mxu0 0.0
  %1392 = vmatprep.subr.mxu0 0.0
  %1393 = vmatpush1.msra.mxu0 0.0
  %1394 = vmatprep.subr.mxu0 0.0
  %1395 = vmatpush1.msra.mxu0 0.0
  %1396 = vmatprep.subr.mxu0 0.0
  %1397 = vmatpush1.msra.mxu0 0.0
  %1398 = vmatprep.subr.mxu0 0.0
  %1399 = vmatpush1.msra.mxu0 0.0
  %1400 = vmatprep.subr.mxu0 0.0
  %1401 = vmatpush1.msra.mxu0 0.0
  %1402 = vmatprep.subr.mxu0 0.0
  %1403 = vmatpush1.msra.mxu0 0.0
  %1404 = vmatprep.subr.mxu0 0.0
  %1405 = vmatpush1.msra.mxu0 0.0
  %1406 = vmatprep.subr.mxu0 0.0
  %1407 = vmatpush1.msra.mxu0 0.0
  %1408 = vmatprep.subr.mxu0 0.0
  %1409 = vmatpush1.msra.mxu0 0.0
  %1410 = vmatprep.subr.mxu0 0.0
  %1411 = vmatpush1.msra.mxu0 0.0
  %1412 = vmatprep.subr.mxu0 0.0
  %1413 = vmatpush1.msra.mxu0 0.0
  %1414 = vmatprep.subr.mxu0 0.0
  %1415 = vmatpush1.msra.mxu0 0.0
  %1416 = vmatprep.subr.mxu0 0.0
  %1417 = vmatpush1.msra.mxu0 0.0
  %1418 = vmatprep.subr.mxu0 0.0
  %1419 = vmatpush1.msra.mxu0 0.0
  %1420 = vmatprep.subr.mxu0 0.0
  %1421 = vmatpush1.msra.mxu0 0.0
  %1422 = vmatprep.subr.mxu0 0.0
  %1423 = vmatpush1.msra.mxu0 0.0
  %1424 = vmatprep.subr.mxu0 0.0
  %1425 = vmatpush1.msra.mxu0 0.0
  %1426 = vmatprep.subr.mxu0 0.0
  %1427 = vmatpush1.msra.mxu0 0.0
  %1428 = vmatprep.mubr.f32.mxu0 0.0
  %1429 = vmatmul.mubr.f32.gmra.mrb[0].mxu0 %v1359
  %v1430 = vpop.f32.mrb[0].mxu0
  %v1431 = vadd.f32 %v1355, %v1430
  %v1432 = vpop.f32.mrb[0].mxu0
  %1433 = vdwg.mxu0
  %v1434 = vmax.f32 %v1431, 0.0
  %v1435 = vld [vmem:[%s2 + $0x550] sm:$0xff]
  %v1437 = vsel %vm277, %v1434, 0
  %1439 = vmatprep.subr.mxu0 0.0
  %1440 = vmatpush1.msra.mxu0 %v1435
  %1441 = vmatprep.subr.mxu0 0.0
  %1442 = vmatpush1.msra.mxu0 0.0
  %1443 = vmatprep.subr.mxu0 0.0
  %1444 = vmatpush1.msra.mxu0 0.0
  %1445 = vmatprep.subr.mxu0 0.0
  %1446 = vmatpush1.msra.mxu0 0.0
  %1447 = vmatprep.subr.mxu0 0.0
  %1448 = vmatpush1.msra.mxu0 0.0
  %1449 = vmatprep.subr.mxu0 0.0
  %1450 = vmatpush1.msra.mxu0 0.0
  %1451 = vmatprep.subr.mxu0 0.0
  %1452 = vmatpush1.msra.mxu0 0.0
  %1453 = vmatprep.subr.mxu0 0.0
  %1454 = vmatpush1.msra.mxu0 0.0
  %1455 = vmatprep.subr.mxu0 0.0
  %1456 = vmatpush1.msra.mxu0 0.0
  %1457 = vmatprep.subr.mxu0 0.0
  %1458 = vmatpush1.msra.mxu0 0.0
  %1459 = vmatprep.subr.mxu0 0.0
  %1460 = vmatpush1.msra.mxu0 0.0
  %1461 = vmatprep.subr.mxu0 0.0
  %1462 = vmatpush1.msra.mxu0 0.0
  %1463 = vmatprep.subr.mxu0 0.0
  %1464 = vmatpush1.msra.mxu0 0.0
  %1465 = vmatprep.subr.mxu0 0.0
  %1466 = vmatpush1.msra.mxu0 0.0
  %1467 = vmatprep.subr.mxu0 0.0
  %1468 = vmatpush1.msra.mxu0 0.0
  %1469 = vmatprep.subr.mxu0 0.0
  %1470 = vmatpush1.msra.mxu0 0.0
  %1471 = vmatprep.subr.mxu0 0.0
  %1472 = vmatpush1.msra.mxu0 0.0
  %1473 = vmatprep.subr.mxu0 0.0
  %1474 = vmatpush1.msra.mxu0 0.0
  %1475 = vmatprep.subr.mxu0 0.0
  %1476 = vmatpush1.msra.mxu0 0.0
  %1477 = vmatprep.subr.mxu0 0.0
  %1478 = vmatpush1.msra.mxu0 0.0
  %1479 = vmatprep.subr.mxu0 0.0
  %1480 = vmatpush1.msra.mxu0 0.0
  %1481 = vmatprep.subr.mxu0 0.0
  %1482 = vmatpush1.msra.mxu0 0.0
  %1483 = vmatprep.subr.mxu0 0.0
  %1484 = vmatpush1.msra.mxu0 0.0
  %1485 = vmatprep.subr.mxu0 0.0
  %1486 = vmatpush1.msra.mxu0 0.0
  %1487 = vmatprep.subr.mxu0 0.0
  %1488 = vmatpush1.msra.mxu0 0.0
  %1489 = vmatprep.subr.mxu0 0.0
  %1490 = vmatpush1.msra.mxu0 0.0
  %1491 = vmatprep.subr.mxu0 0.0
  %1492 = vmatpush1.msra.mxu0 0.0
  %1493 = vmatprep.subr.mxu0 0.0
  %1494 = vmatpush1.msra.mxu0 0.0
  %1495 = vmatprep.subr.mxu0 0.0
  %1496 = vmatpush1.msra.mxu0 0.0
  %1497 = vmatprep.subr.mxu0 0.0
  %1498 = vmatpush1.msra.mxu0 0.0
  %1499 = vmatprep.subr.mxu0 0.0
  %1500 = vmatpush1.msra.mxu0 0.0
  %1501 = vmatprep.subr.mxu0 0.0
  %1502 = vmatpush1.msra.mxu0 0.0
  %1503 = vmatprep.mubr.f32.mxu0 0.0
  %1504 = vmatmul.mubr.f32.gmra.mrb[0].mxu0 %v1437
  %v1505 = vpop.f32.mrb[0].mxu0
  %v1506 = vadd.f32 0.0, %v1505
  %v1507 = vpop.f32.mrb[0].mxu0
  %1508 = vdwg.mxu0
  %v1509 = vadd.f32 %v1133, %v1506
  %v1510 = vmax.f32 %v1509, 0.0
  %v1511 = vld [vmem:[%s2 + $0x560] sm:$0xff]
  %v1512 = vld [vmem:[%s2 + $0x570] sm:$0xff]
  %v1513 = vld [vmem:[%s2 + $0x580] sm:$0xff]
  %v1514 = vld [vmem:[%s2 + $0x590] sm:$0xff]
  %v1515 = vld [vmem:[%s2 + $0x5a0] sm:$0xff]
  %v1516 = vld [vmem:[%s2 + $0x5b0] sm:$0xff]
  %v1517 = vld [vmem:[%s2 + $0x5c0] sm:$0xff]
  %v1518 = vld [vmem:[%s2 + $0x5d0] sm:$0xff]
  %v1519 = vld [vmem:[%s1 + $0x15] ss:$0 sm:$0xff]
  %vm1520 = vcmask 523264
  %v1522 = vsel %vm1520, %v1510, 0
  %1524 = vmatprep.subr.mxu0 0.0
  %1525 = vmatpush1.msra.mxu0 %v1511
  %1526 = vmatprep.subr.mxu0 0.0
  %1527 = vmatpush1.msra.mxu0 %v1512
  %1528 = vmatprep.subr.mxu0 0.0
  %1529 = vmatpush1.msra.mxu0 %v1513
  %1530 = vmatprep.subr.mxu0 0.0
  %1531 = vmatpush1.msra.mxu0 %v1514
  %1532 = vmatprep.subr.mxu0 0.0
  %1533 = vmatpush1.msra.mxu0 %v1515
  %1534 = vmatprep.subr.mxu0 0.0
  %1535 = vmatpush1.msra.mxu0 %v1516
  %1536 = vmatprep.subr.mxu0 0.0
  %1537 = vmatpush1.msra.mxu0 %v1517
  %1538 = vmatprep.subr.mxu0 0.0
  %1539 = vmatpush1.msra.mxu0 %v1518
  %1540 = vmatprep.subr.mxu0 0.0
  %1541 = vmatpush1.msra.mxu0 0.0
  %1542 = vmatprep.subr.mxu0 0.0
  %1543 = vmatpush1.msra.mxu0 0.0
  %1544 = vmatprep.subr.mxu0 0.0
  %1545 = vmatpush1.msra.mxu0 0.0
  %1546 = vmatprep.subr.mxu0 0.0
  %1547 = vmatpush1.msra.mxu0 0.0
  %1548 = vmatprep.subr.mxu0 0.0
  %1549 = vmatpush1.msra.mxu0 0.0
  %1550 = vmatprep.subr.mxu0 0.0
  %1551 = vmatpush1.msra.mxu0 0.0
  %1552 = vmatprep.subr.mxu0 0.0
  %1553 = vmatpush1.msra.mxu0 0.0
  %1554 = vmatprep.subr.mxu0 0.0
  %1555 = vmatpush1.msra.mxu0 0.0
  %1556 = vmatprep.subr.mxu0 0.0
  %1557 = vmatpush1.msra.mxu0 0.0
  %1558 = vmatprep.subr.mxu0 0.0
  %1559 = vmatpush1.msra.mxu0 0.0
  %1560 = vmatprep.subr.mxu0 0.0
  %1561 = vmatpush1.msra.mxu0 0.0
  %1562 = vmatprep.subr.mxu0 0.0
  %1563 = vmatpush1.msra.mxu0 0.0
  %1564 = vmatprep.subr.mxu0 0.0
  %1565 = vmatpush1.msra.mxu0 0.0
  %1566 = vmatprep.subr.mxu0 0.0
  %1567 = vmatpush1.msra.mxu0 0.0
  %1568 = vmatprep.subr.mxu0 0.0
  %1569 = vmatpush1.msra.mxu0 0.0
  %1570 = vmatprep.subr.mxu0 0.0
  %1571 = vmatpush1.msra.mxu0 0.0
  %1572 = vmatprep.subr.mxu0 0.0
  %1573 = vmatpush1.msra.mxu0 0.0
  %1574 = vmatprep.subr.mxu0 0.0
  %1575 = vmatpush1.msra.mxu0 0.0
  %1576 = vmatprep.subr.mxu0 0.0
  %1577 = vmatpush1.msra.mxu0 0.0
  %1578 = vmatprep.subr.mxu0 0.0
  %1579 = vmatpush1.msra.mxu0 0.0
  %1580 = vmatprep.subr.mxu0 0.0
  %1581 = vmatpush1.msra.mxu0 0.0
  %1582 = vmatprep.subr.mxu0 0.0
  %1583 = vmatpush1.msra.mxu0 0.0
  %1584 = vmatprep.subr.mxu0 0.0
  %1585 = vmatpush1.msra.mxu0 0.0
  %1586 = vmatprep.subr.mxu0 0.0
  %1587 = vmatpush1.msra.mxu0 0.0
  %1588 = vmatprep.mubr.f32.mxu0 0.0
  %1589 = vmatmul.mubr.f32.gmra.mrb[0].mxu0 %v1522
  %v1590 = vpop.f32.mrb[0].mxu0
  %v1591 = vadd.f32 %v1519, %v1590
  %v1592 = vpop.f32.mrb[0].mxu0
  %1593 = vdwg.mxu0
  %v1594 = vmax.f32 %v1591, 0.0
  %v1595 = vld [vmem:[%s2 + $0x5e0] sm:$0xff]
  %v1596 = vld [vmem:[%s2 + $0x5f0] sm:$0xff]
  %v1597 = vld [vmem:[%s2 + $0x600] sm:$0xff]
  %v1598 = vld [vmem:[%s2 + $0x610] sm:$0xff]
  %v1599 = vld [vmem:[%s2 + $0x620] sm:$0xff]
  %v1600 = vld [vmem:[%s2 + $0x630] sm:$0xff]
  %v1601 = vld [vmem:[%s2 + $0x640] sm:$0xff]
  %v1602 = vld [vmem:[%s2 + $0x650] sm:$0xff]
  %v1603 = vld [vmem:[%s1 + $0x16] ss:$0 sm:$0xff]
  %v1605 = vsel %vm1520, %v1594, 0
  %1607 = vmatprep.subr.mxu0 0.0
  %1608 = vmatpush1.msra.mxu0 %v1595
  %1609 = vmatprep.subr.mxu0 0.0
  %1610 = vmatpush1.msra.mxu0 %v1596
  %1611 = vmatprep.subr.mxu0 0.0
  %1612 = vmatpush1.msra.mxu0 %v1597
  %1613 = vmatprep.subr.mxu0 0.0
  %1614 = vmatpush1.msra.mxu0 %v1598
  %1615 = vmatprep.subr.mxu0 0.0
  %1616 = vmatpush1.msra.mxu0 %v1599
  %1617 = vmatprep.subr.mxu0 0.0
  %1618 = vmatpush1.msra.mxu0 %v1600
  %1619 = vmatprep.subr.mxu0 0.0
  %1620 = vmatpush1.msra.mxu0 %v1601
  %1621 = vmatprep.subr.mxu0 0.0
  %1622 = vmatpush1.msra.mxu0 %v1602
  %1623 = vmatprep.subr.mxu0 0.0
  %1624 = vmatpush1.msra.mxu0 0.0
  %1625 = vmatprep.subr.mxu0 0.0
  %1626 = vmatpush1.msra.mxu0 0.0
  %1627 = vmatprep.subr.mxu0 0.0
  %1628 = vmatpush1.msra.mxu0 0.0
  %1629 = vmatprep.subr.mxu0 0.0
  %1630 = vmatpush1.msra.mxu0 0.0
  %1631 = vmatprep.subr.mxu0 0.0
  %1632 = vmatpush1.msra.mxu0 0.0
  %1633 = vmatprep.subr.mxu0 0.0
  %1634 = vmatpush1.msra.mxu0 0.0
  %1635 = vmatprep.subr.mxu0 0.0
  %1636 = vmatpush1.msra.mxu0 0.0
  %1637 = vmatprep.subr.mxu0 0.0
  %1638 = vmatpush1.msra.mxu0 0.0
  %1639 = vmatprep.subr.mxu0 0.0
  %1640 = vmatpush1.msra.mxu0 0.0
  %1641 = vmatprep.subr.mxu0 0.0
  %1642 = vmatpush1.msra.mxu0 0.0
  %1643 = vmatprep.subr.mxu0 0.0
  %1644 = vmatpush1.msra.mxu0 0.0
  %1645 = vmatprep.subr.mxu0 0.0
  %1646 = vmatpush1.msra.mxu0 0.0
  %1647 = vmatprep.subr.mxu0 0.0
  %1648 = vmatpush1.msra.mxu0 0.0
  %1649 = vmatprep.subr.mxu0 0.0
  %1650 = vmatpush1.msra.mxu0 0.0
  %1651 = vmatprep.subr.mxu0 0.0
  %1652 = vmatpush1.msra.mxu0 0.0
  %1653 = vmatprep.subr.mxu0 0.0
  %1654 = vmatpush1.msra.mxu0 0.0
  %1655 = vmatprep.subr.mxu0 0.0
  %1656 = vmatpush1.msra.mxu0 0.0
  %1657 = vmatprep.subr.mxu0 0.0
  %1658 = vmatpush1.msra.mxu0 0.0
  %1659 = vmatprep.subr.mxu0 0.0
  %1660 = vmatpush1.msra.mxu0 0.0
  %1661 = vmatprep.subr.mxu0 0.0
  %1662 = vmatpush1.msra.mxu0 0.0
  %1663 = vmatprep.subr.mxu0 0.0
  %1664 = vmatpush1.msra.mxu0 0.0
  %1665 = vmatprep.subr.mxu0 0.0
  %1666 = vmatpush1.msra.mxu0 0.0
  %1667 = vmatprep.subr.mxu0 0.0
  %1668 = vmatpush1.msra.mxu0 0.0
  %1669 = vmatprep.subr.mxu0 0.0
  %1670 = vmatpush1.msra.mxu0 0.0
  %1671 = vmatprep.mubr.f32.mxu0 0.0
  %1672 = vmatmul.mubr.f32.gmra.mrb[0].mxu0 %v1605
  %v1673 = vpop.f32.mrb[0].mxu0
  %v1674 = vadd.f32 %v1603, %v1673
  %v1675 = vpop.f32.mrb[0].mxu0
  %1676 = vdwg.mxu0
  %v1677 = vxor.u32 %v1674, 2147483648
  %v1678 = vmul.f32 %v1677, 1.442695
  %v1679 = vpow.pop %v1678
  %v1680 = vadd.f32 %v1679, 1.0
  %v1681 = vrcp.pop %v1680
  %v1682 = vmul.f32 1.0, %v1681
  %1685 = vrot.lane.b32.xlu0 %v1307, 32
  %v1686 = vpop.permute.xlu0 %1685
  %1688 = vrot.lane.b32.xlu0 %v1328, 32
  %v1689 = vpop.permute.xlu0 %1688
  %1692 = vrot.lane.b32.xlu0 %v1682, 38
  %v1693 = vpop.permute.xlu0 %1692
  %v1695 = vsel %vm197, %v535, %v1686
  %vm1696 = vcmask 269312
  %v1697 = vsel %vm1696, %v1695, %v1689
  %vm1698 = vcmask 302080
  %v1699 = vsel %vm1698, %v1697, %v1353
  %vm1700 = vcmask 310272
  %v1701 = vsel %vm1700, %v1699, %v1693
  %vm1702 = vcmask 318464
  %v1703 = vsel %vm1702, %v1701, %v964
  %vm1704 = vcmask 326656
  %v1705 = vsel %vm1704, %v1703, 0.0
  %1706 = vst [vmem:[%s3] sm:$0xff] %v1705
  // Predicated region
  $region14: #{bmil_forward.1} parent=0 // pred_check
    _
  $region15: #{bmil_forward.1} parent=0 // pred_check_branch
    %1708 = sbr.rel (0) target = $region17
  $region16: #{bmil_forward.1} parent=0 // pred_region
    _
  $region17: #{bmil_forward.1} parent=0 // pred_fallthru
    _
  // Predicated region
  $region18: #{bmil_forward.1} parent=0 // pred_check
    _
  $region19: #{bmil_forward.1} parent=0 // pred_check_branch
    %1710 = sbr.rel (0) target = $region21
  $region20: #{bmil_forward.1} parent=0 // pred_region
    _
  $region21: #{bmil_forward.1} parent=0 // pred_fallthru
    _

</llo_original>
